<compile_context>
chip_gen: v7x
topology: tpu7x:2x2x1
jax: 0.10.0
libtpu: 0.0.40
codegen_flags: <defaults>
</compile_context>

<pallas_src>
import functools
import math

import jax
import jax.numpy as jnp
from jax import lax
from jax.experimental import pallas as pl
from jax.experimental.pallas import tpu as pltpu

_BN_EPS = 1e-5


# ----------------------------------------------------------------------------
# Kernels
# ----------------------------------------------------------------------------
def gcn_fused_kernel(*refs, n_rows, tile, has_w):
    """Single-launch GCN: matmul + BatchNorm(train) + ReLU, output VMEM-resident.

    Grid axis iterates adjacency row tiles sequentially ("arbitrary"):
      step i  : write pre-BN rows [i*tile, i*tile+tile) into the resident
                output block and accumulate f32 column sum / sum-of-squares.
      last i  : fold the BN affine and apply scale/shift + ReLU in place.
    Zero-padded adjacency rows produce exactly-zero outputs, so dividing the
    accumulated sums by the true row count keeps the statistics exact.
    """
    if has_w:
        (r_ref, w_ref, gamma_ref, beta_ref, adj_ref,
         o_ref, sum_ref, sumsq_ref) = refs
    else:
        (r_ref, gamma_ref, beta_ref, adj_ref,
         o_ref, sum_ref, sumsq_ref) = refs
        w_ref = None

    i = pl.program_id(0)

    @pl.when(i == 0)
    def _():
        sum_ref[...] = jnp.zeros_like(sum_ref)
        sumsq_ref[...] = jnp.zeros_like(sumsq_ref)

    # Cast the streamed f32 adjacency tile to bf16 in VMEM (MXU operands).
    a = adj_ref[...].astype(jnp.bfloat16)
    out = jnp.dot(a, r_ref[...], preferred_element_type=jnp.float32)
    if w_ref is not None:                      # (A @ X) @ W re-association
        out = jnp.dot(out.astype(jnp.bfloat16), w_ref[...],
                      preferred_element_type=jnp.float32)

    row0 = pl.multiple_of(i * tile, tile)
    o_ref[pl.ds(row0, tile), :] = out

    # f32 sublane (XLU) reductions -- no bf16 stat casts, no MXU stat matmuls.
    sum_ref[...] += jnp.sum(out, axis=0, keepdims=True)
    sumsq_ref[...] += jnp.sum(out * out, axis=0, keepdims=True)

    @pl.when(i == pl.num_programs(0) - 1)
    def _():
        inv_n = 1.0 / n_rows
        mean = sum_ref[...] * inv_n
        var = jnp.maximum(sumsq_ref[...] * inv_n - mean * mean, 0.0)
        inv_std = lax.rsqrt(var + _BN_EPS)
        scale = gamma_ref[...] * inv_std
        shift = beta_ref[...] - mean * scale
        o_ref[...] = jnp.maximum(o_ref[...] * scale + shift, 0.0)


def gcn_pass1_kernel(*refs, has_w):
    """Pass 1 (large-N path): pre-BN tile in bf16 + f32 per-tile statistics."""
    if has_w:
        r_ref, w_ref, adj_ref, out_ref, sum_ref, sumsq_ref = refs
    else:
        r_ref, adj_ref, out_ref, sum_ref, sumsq_ref = refs
        w_ref = None

    a = adj_ref[...].astype(jnp.bfloat16)
    out = jnp.dot(a, r_ref[...], preferred_element_type=jnp.float32)
    if w_ref is not None:
        out = jnp.dot(out.astype(jnp.bfloat16), w_ref[...],
                      preferred_element_type=jnp.float32)

    f_out = out.shape[1]
    out_ref[...] = out.astype(out_ref.dtype)          # bf16 pre-BN intermediate
    sum_ref[...] = jnp.sum(out, axis=0, keepdims=True).reshape(1, 1, f_out)
    sumsq_ref[...] = jnp.sum(out * out, axis=0, keepdims=True).reshape(1, 1, f_out)


def bn_relu_kernel(pre_ref, scale_ref, shift_ref, o_ref):
    """Pass 2: y = relu(pre * scale + shift), BN affine folded per feature."""
    pre = pre_ref[...].astype(jnp.float32)
    o_ref[...] = jnp.maximum(pre * scale_ref[...] + shift_ref[...], 0.0)


# ----------------------------------------------------------------------------
# Tiling / VMEM helpers
# ----------------------------------------------------------------------------
def _round_up(v, m):
    return ((v + m - 1) // m) * m


def _vmem_capacity_bytes():
    try:
        return int(pltpu.get_tpu_info().vmem_capacity_bytes)
    except Exception:
        return 64 * 1024 * 1024      # conservative (v7x per-core) fallback


def _choose_tile(n, budget, resident_per_row, stream_per_row, fixed):
    """Largest row tile fitting `budget`; prefers minimal row padding and >=2
    grid steps (so the adjacency DMA stream overlaps the MXU)."""
    n8 = _round_up(max(n, 1), 8)
    best = None
    for cand in (1024, 512, 256, 128, 64, 32, 16, 8):
        t = min(cand, n8)
        n_pad = _round_up(n, t)
        need = fixed + n_pad * resident_per_row + t * stream_per_row
        if need <= budget:
            key = (n_pad, 1 if n_pad // t < 2 else 0, -t)
            if best is None or key < best[0]:
                best = (key, t, n_pad)
    if best is not None:
        return best[1], best[2], True
    t = min(8, n8)
    return t, _round_up(n, t), False


def _choose_pass2_tile(n_pad, pass1_tile, budget, per_row, fixed):
    cands = [n_pad] + [t for t in (8192, 4096, 2048, 1024, 512, 256, 128,
                                   64, 32, 16, 8) if n_pad % t == 0]
    for t in cands:
        if fixed + t * per_row <= budget:
            return t
    return pass1_tile


# ----------------------------------------------------------------------------
# Wrapper
# ----------------------------------------------------------------------------
def graph_convolution(x, adj, weight, gamma, beta, *, force_two_pass=False):
    """Fused GraphConvolution forward (bias=False, training-mode BatchNorm1d)."""
    n, f_in = x.shape
    f_out = weight.shape[1]
    reassoc = f_in <= f_out          # stream the narrower operand through A

    adj = adj.astype(jnp.float32)    # no-op if already f32; cast happens in-kernel
    x_bf = x.astype(jnp.bfloat16)
    w_bf = weight.astype(jnp.bfloat16)
    if reassoc:
        r_bf, f_r = x_bf, f_in                       # kernel computes (A@X)@W
    else:
        # Hoist support = X @ W (tiny): keeps the row grid fully parallel and
        # streams the narrower (N, F_out) operand.
        r_bf = jnp.dot(x_bf, w_bf,
                       preferred_element_type=jnp.float32).astype(jnp.bfloat16)
        f_r = f_out
    gamma_r = gamma.astype(jnp.float32).reshape(1, f_out)
    beta_r = beta.astype(jnp.float32).reshape(1, f_out)

    cap = _vmem_capacity_bytes()
    budget = int(0.65 * cap)
    vmem_limit = int(0.85 * cap)

    # ---------------- fused single-kernel path (output VMEM-resident) -------
    fused_res_per_row = 8 * f_out + 4 * f_r           # f32 out + bf16 R (x2 bufs)
    fused_stream_per_row = 8 * n                      # f32 adj tile rows (x2 bufs)
    fused_fixed = (4 * f_in * f_out if reassoc else 0) + 64 * f_out + (1 << 20)
    tile_f, n_pad_f, fits_fused = _choose_tile(
        n, budget, fused_res_per_row, fused_stream_per_row, fused_fixed)

    if fits_fused and not force_two_pass:
        adj_p = adj if n_pad_f == n else jnp.pad(adj, ((0, n_pad_f - n), (0, 0)))
        in_specs = [pl.BlockSpec((n, f_r), lambda i: (0, 0))]
        operands = [r_bf]
        if reassoc:
            in_specs.append(pl.BlockSpec((f_in, f_out), lambda i: (0, 0)))
            operands.append(w_bf)
        in_specs += [
            pl.BlockSpec((1, f_out), lambda i: (0, 0)),       # gamma
            pl.BlockSpec((1, f_out), lambda i: (0, 0)),       # beta
            pl.BlockSpec((tile_f, n), lambda i: (i, 0)),      # adj row tile (f32)
        ]
        operands += [gamma_r, beta_r, adj_p]

        y_pad = pl.pallas_call(
            functools.partial(gcn_fused_kernel, n_rows=n, tile=tile_f,
                              has_w=reassoc),
            grid=(n_pad_f // tile_f,),
            in_specs=in_specs,
            out_specs=pl.BlockSpec((n_pad_f, f_out), lambda i: (0, 0)),
            out_shape=jax.ShapeDtypeStruct((n_pad_f, f_out), jnp.float32),
            scratch_shapes=[pltpu.VMEM((1, f_out), jnp.float32),
                            pltpu.VMEM((1, f_out), jnp.float32)],
            compiler_params=pltpu.CompilerParams(
                dimension_semantics=("arbitrary",),
                vmem_limit_bytes=vmem_limit),
        )(*operands)
        return y_pad if n_pad_f == n else y_pad[:n]

    # ---------------- two-pass path (large N) -------------------------------
    p1_res_per_row = 4 * f_r                               # bf16 R (x2 bufs)
    p1_stream_per_row = 8 * n + 4 * f_out                  # adj f32 + bf16 out tile
    p1_fixed = (4 * f_in * f_out if reassoc else 0) + 64 * f_out + (1 << 20)
    tile, n_pad, _ = _choose_tile(n, budget, p1_res_per_row,
                                  p1_stream_per_row, p1_fixed)
    num_tiles = n_pad // tile
    adj_p = adj if n_pad == n else jnp.pad(adj, ((0, n_pad - n), (0, 0)))

    in_specs = [pl.BlockSpec((n, f_r), lambda i: (0, 0))]
    operands = [r_bf]
    if reassoc:
        in_specs.append(pl.BlockSpec((f_in, f_out), lambda i: (0, 0)))
        operands.append(w_bf)
    in_specs.append(pl.BlockSpec((tile, n), lambda i: (i, 0)))
    operands.append(adj_p)

    pre_bn, psum, psumsq = pl.pallas_call(
        functools.partial(gcn_pass1_kernel, has_w=reassoc),
        grid=(num_tiles,),
        in_specs=in_specs,
        out_specs=(
            pl.BlockSpec((tile, f_out), lambda i: (i, 0)),
            pl.BlockSpec((1, 1, f_out), lambda i: (i, 0, 0)),
            pl.BlockSpec((1, 1, f_out), lambda i: (i, 0, 0)),
        ),
        out_shape=(
            jax.ShapeDtypeStruct((n_pad, f_out), jnp.bfloat16),        # pre-BN
            jax.ShapeDtypeStruct((num_tiles, 1, f_out), jnp.float32),  # sums
            jax.ShapeDtypeStruct((num_tiles, 1, f_out), jnp.float32),  # sumsqs
        ),
        compiler_params=pltpu.CompilerParams(
            dimension_semantics=("parallel",), vmem_limit_bytes=vmem_limit),
    )(*operands)

    # Tiny O(num_tiles * F_out) f32 fold of the partial statistics into a
    # per-feature scale/shift (padded rows are exact zeros -> divide by true n).
    total = jnp.sum(psum, axis=0)[0]
    total_sq = jnp.sum(psumsq, axis=0)[0]
    mean = total / n
    var = jnp.maximum(total_sq / n - mean * mean, 0.0)     # biased (training) var
    inv_std = lax.rsqrt(var + _BN_EPS)
    g32 = gamma.astype(jnp.float32)
    scale = (g32 * inv_std).reshape(1, f_out)
    shift = (beta.astype(jnp.float32) - mean * g32 * inv_std).reshape(1, f_out)

    tile2 = _choose_pass2_tile(n_pad, tile, budget, 12 * f_out,
                               32 * f_out + (1 << 19))
    y_pad = pl.pallas_call(
        bn_relu_kernel,
        grid=(n_pad // tile2,),
        in_specs=[
            pl.BlockSpec((tile2, f_out), lambda i: (i, 0)),
            pl.BlockSpec((1, f_out), lambda i: (0, 0)),
            pl.BlockSpec((1, f_out), lambda i: (0, 0)),
        ],
        out_specs=pl.BlockSpec((tile2, f_out), lambda i: (i, 0)),
        out_shape=jax.ShapeDtypeStruct((n_pad, f_out), jnp.float32),
        compiler_params=pltpu.CompilerParams(
            dimension_semantics=("parallel",), vmem_limit_bytes=vmem_limit),
    )(pre_bn, scale, shift)
    return y_pad if n_pad == n else y_pad[:n]


# ----------------------------------------------------------------------------
# Reference + test harness
# ----------------------------------------------------------------------------
def reference(x, adj, weight, gamma, beta):
    """Pure-JAX f32 reference matching the PyTorch module forward (training)."""
    hp = lax.Precision.HIGHEST
    support = jnp.dot(x, weight, precision=hp)
    out = jnp.dot(adj, support, precision=hp)
    mean = out.mean(axis=0, keepdims=True)
    var = ((out - mean) ** 2).mean(axis=0, keepdims=True)
    y = (out - mean) / jnp.sqrt(var + _BN_EPS) * gamma[None, :] + beta[None, :]
    return jnp.maximum(y, 0.0)


def _make_inputs(key, n, f_in, f_out, random_affine):
    k_x, k_a, k_w, k_g, k_b = jax.random.split(key, 5)
    x = jax.random.normal(k_x, (n, f_in), dtype=jnp.float32)
    # Symmetrically-normalized random adjacency (dense stand-in for spmm input).
    a_raw = (jax.random.uniform(k_a, (n, n)) > 0.9).astype(jnp.float32)
    a_raw = jnp.maximum(a_raw, a_raw.T) + jnp.eye(n, dtype=jnp.float32)
    d_inv_sqrt = 1.0 / jnp.sqrt(jnp.sum(a_raw, axis=1))
    adj = a_raw * d_inv_sqrt[:, None] * d_inv_sqrt[None, :]
    # weight ~ U(-stdv, stdv), stdv = 1/sqrt(out_features)  (reset_parameters())
    stdv = 1.0 / math.sqrt(f_out)
    weight = jax.random.uniform(k_w, (f_in, f_out), minval=-stdv, maxval=stdv,
                                dtype=jnp.float32)
    if random_affine:
        gamma = jax.random.uniform(k_g, (f_out,), minval=0.8, maxval=1.2,
                                   dtype=jnp.float32)
        beta = jax.random.uniform(k_b, (f_out,), minval=-0.5, maxval=0.5,
                                  dtype=jnp.float32)
    else:   # fresh BatchNorm1d defaults
        gamma = jnp.ones((f_out,), jnp.float32)
        beta = jnp.zeros((f_out,), jnp.float32)
    return x, adj, weight, gamma, beta


if __name__ == "__main__":
    gcn = jax.jit(graph_convolution, static_argnames=("force_two_pass",))
    key = jax.random.PRNGKey(0)
    keys = jax.random.split(key, 5)

    configs = [
        # (key, N, F_in, F_out, random BN affine, force two-pass path)
        (keys[0], 512, 64, 128, False, False),  # fused, multi-tile, (A@X)@W
        (keys[1], 512, 128, 64, True, False),   # fused, hoisted support A@(X@W)
        (keys[2], 200, 48, 96, True, False),    # fused, N % 8 != 0 -> zero-pad rows
        (keys[3], 512, 64, 128, True, True),    # two-pass (large-N path), reassoc
        (keys[4], 384, 96, 64, True, True),     # two-pass (large-N path), support
    ]
    for k, n, f_in, f_out, rand_affine, two_pass in configs:
        x, adj, weight, gamma, beta = _make_inputs(k, n, f_in, f_out, rand_affine)
        out = jax.block_until_ready(
            gcn(x, adj, weight, gamma, beta, force_two_pass=two_pass))
        ref = reference(x, adj, weight, gamma, beta)
        assert out.shape == (n, f_out)
        err = jnp.abs(out - ref)
        # bf16 MXU operands + bf16 pre-BN intermediate (two-pass path): allow a
        # small numerical drift vs. the f32 reference.
        assert float(err.max()) < 8e-2, f"max err {float(err.max()):.4g}"
        assert float(err.mean()) < 1e-2, f"mean err {float(err.mean()):.4g}"
    print("KERNEL_OK")
</pallas_src>

<mosaic_0001>
module attributes {stable_mosaic.version = 11 : i64} {
  func.func @gcn_fused_kernel(%arg0: i32, %arg1: memref<512x64xbf16, #tpu.memory_space<vmem>>, %arg2: memref<64x128xbf16, #tpu.memory_space<vmem>>, %arg3: memref<1x128xf32, #tpu.memory_space<vmem>>, %arg4: memref<1x128xf32, #tpu.memory_space<vmem>>, %arg5: memref<256x512xf32, #tpu.memory_space<vmem>>, %arg6: memref<512x128xf32, #tpu.memory_space<vmem>>, %arg7: memref<1x128xf32, #tpu.memory_space<vmem>>, %arg8: memref<1x128xf32, #tpu.memory_space<vmem>>) attributes {dimension_semantics = [#tpu.dimension_semantics<arbitrary>], iteration_bounds = array<i64: 2>, scalar_prefetch = 0 : i64, scratch_operands = 2 : i64, tpu.core_type = #tpu.core_type<tc>, window_params = [{pipeline_mode = #tpu.pipeline_mode<synchronous>, transform_indices = @transform_0, window_bounds = array<i64: 512, 64>}, {pipeline_mode = #tpu.pipeline_mode<synchronous>, transform_indices = @transform_1, window_bounds = array<i64: 64, 128>}, {pipeline_mode = #tpu.pipeline_mode<synchronous>, transform_indices = @transform_2, window_bounds = array<i64: 1, 128>}, {pipeline_mode = #tpu.pipeline_mode<synchronous>, transform_indices = @transform_3, window_bounds = array<i64: 1, 128>}, {transform_indices = @transform_4, window_bounds = array<i64: 256, 512>}, {pipeline_mode = #tpu.pipeline_mode<synchronous>, transform_indices = @transform_5, window_bounds = array<i64: 512, 128>}]} {
    %c0_i32 = arith.constant 0 : i32
    %0 = arith.cmpi eq, %arg0, %c0_i32 : i32
    %1 = arith.extui %0 : i1 to i32
    %c0_i32_0 = arith.constant 0 : i32
    %2 = arith.cmpi ne, %1, %c0_i32_0 : i32
    scf.if %2 {
      %cst_19 = arith.constant 0.000000e+00 : f32
      %28 = vector.broadcast %cst_19 : f32 to vector<1x128xf32>
      %c0_20 = arith.constant 0 : index
      %c0_21 = arith.constant 0 : index
      %29 = vector.load %arg7[%c0_20, %c0_21] : memref<1x128xf32, #tpu.memory_space<vmem>>, vector<1x128xf32>
      tpu.vector_store %arg7[%c0_20, %c0_21], %28 {strides = array<i32>} : memref<1x128xf32, #tpu.memory_space<vmem>>, vector<1x128xf32>,
      %cst_22 = arith.constant 0.000000e+00 : f32
      %30 = vector.broadcast %cst_22 : f32 to vector<1x128xf32>
      %c0_23 = arith.constant 0 : index
      %c0_24 = arith.constant 0 : index
      %31 = vector.load %arg8[%c0_23, %c0_24] : memref<1x128xf32, #tpu.memory_space<vmem>>, vector<1x128xf32>
      tpu.vector_store %arg8[%c0_23, %c0_24], %30 {strides = array<i32>} : memref<1x128xf32, #tpu.memory_space<vmem>>, vector<1x128xf32>,
    } else {
    }
    %c0 = arith.constant 0 : index
    %c0_1 = arith.constant 0 : index
    %3 = vector.load %arg5[%c0, %c0_1] : memref<256x512xf32, #tpu.memory_space<vmem>>, vector<256x512xf32>
    %4 = arith.truncf %3 : vector<256x512xf32> to vector<256x512xbf16>
    %c0_2 = arith.constant 0 : index
    %c0_3 = arith.constant 0 : index
    %5 = vector.load %arg1[%c0_2, %c0_3] : memref<512x64xbf16, #tpu.memory_space<vmem>>, vector<512x64xbf16>
    %cst = arith.constant dense<0.000000e+00> : vector<256x64xf32>
    %6 = tpu.matmul %4, %5, %cst {dimension_numbers = #tpu.dot_dimension_numbers<[1], [0], [0], [1], [0, 0, 1, 1], [], []>} : vector<256x512xbf16>, vector<512x64xbf16>, vector<256x64xf32> -> vector<256x64xf32>
    %7 = arith.truncf %6 : vector<256x64xf32> to vector<256x64xbf16>
    %c0_4 = arith.constant 0 : index
    %c0_5 = arith.constant 0 : index
    %8 = vector.load %arg2[%c0_4, %c0_5] : memref<64x128xbf16, #tpu.memory_space<vmem>>, vector<64x128xbf16>
    %cst_6 = arith.constant dense<0.000000e+00> : vector<256x128xf32>
    %9 = tpu.matmul %7, %8, %cst_6 {dimension_numbers = #tpu.dot_dimension_numbers<[1], [0], [0], [1], [0, 0, 1, 1], [], []>} : vector<256x64xbf16>, vector<64x128xbf16>, vector<256x128xf32> -> vector<256x128xf32>
    %c256_i32 = arith.constant 256 : i32
    %10 = arith.muli %arg0, %c256_i32 : i32
    %11 = tpu.assume_multiple %10, 256 : i32
    %12 = arith.index_cast %11 : i32 to index
    %c0_7 = arith.constant 0 : index
    %13 = vector.load %arg6[%12, %c0_7] : memref<512x128xf32, #tpu.memory_space<vmem>>, vector<256x128xf32>
    tpu.vector_store %arg6[%12, %c0_7], %9 {strides = array<i32>} : memref<512x128xf32, #tpu.memory_space<vmem>>, vector<256x128xf32>,
    %c0_8 = arith.constant 0 : index
    %c0_9 = arith.constant 0 : index
    %14 = vector.load %arg7[%c0_8, %c0_9] : memref<1x128xf32, #tpu.memory_space<vmem>>, vector<1x128xf32>
    %cst_10 = arith.constant dense<0.000000e+00> : vector<128xf32>
    %15 = vector.multi_reduction <add>, %9, %cst_10 [0] : vector<256x128xf32> to vector<128xf32>
    %16 = vector.shape_cast %15 : vector<128xf32> to vector<1x128xf32>
    %17 = arith.addf %14, %16 : vector<1x128xf32>
    %c0_11 = arith.constant 0 : index
    %c0_12 = arith.constant 0 : index
    %18 = vector.load %arg7[%c0_11, %c0_12] : memref<1x128xf32, #tpu.memory_space<vmem>>, vector<1x128xf32>
    tpu.vector_store %arg7[%c0_11, %c0_12], %17 {strides = array<i32>} : memref<1x128xf32, #tpu.memory_space<vmem>>, vector<1x128xf32>,
    %c0_13 = arith.constant 0 : index
    %c0_14 = arith.constant 0 : index
    %19 = vector.load %arg8[%c0_13, %c0_14] : memref<1x128xf32, #tpu.memory_space<vmem>>, vector<1x128xf32>
    %20 = arith.mulf %9, %9 : vector<256x128xf32>
    %cst_15 = arith.constant dense<0.000000e+00> : vector<128xf32>
    %21 = vector.multi_reduction <add>, %20, %cst_15 [0] : vector<256x128xf32> to vector<128xf32>
    %22 = vector.shape_cast %21 : vector<128xf32> to vector<1x128xf32>
    %23 = arith.addf %19, %22 : vector<1x128xf32>
    %c0_16 = arith.constant 0 : index
    %c0_17 = arith.constant 0 : index
    %24 = vector.load %arg8[%c0_16, %c0_17] : memref<1x128xf32, #tpu.memory_space<vmem>>, vector<1x128xf32>
    tpu.vector_store %arg8[%c0_16, %c0_17], %23 {strides = array<i32>} : memref<1x128xf32, #tpu.memory_space<vmem>>, vector<1x128xf32>,
    %c1_i32 = arith.constant 1 : i32
    %25 = arith.cmpi eq, %arg0, %c1_i32 : i32
    %26 = arith.extui %25 : i1 to i32
    %c0_i32_18 = arith.constant 0 : i32
    %27 = arith.cmpi ne, %26, %c0_i32_18 : i32
    scf.if %27 {
      %c0_19 = arith.constant 0 : index
      %c0_20 = arith.constant 0 : index
      %28 = vector.load %arg7[%c0_19, %c0_20] : memref<1x128xf32, #tpu.memory_space<vmem>>, vector<1x128xf32>
      %cst_21 = arith.constant 0.001953125 : f32
      %29 = vector.broadcast %cst_21 : f32 to vector<1x128xf32>
      %30 = arith.mulf %28, %29 : vector<1x128xf32>
      %c0_22 = arith.constant 0 : index
      %c0_23 = arith.constant 0 : index
      %31 = vector.load %arg8[%c0_22, %c0_23] : memref<1x128xf32, #tpu.memory_space<vmem>>, vector<1x128xf32>
      %cst_24 = arith.constant 0.001953125 : f32
      %32 = vector.broadcast %cst_24 : f32 to vector<1x128xf32>
      %33 = arith.mulf %31, %32 : vector<1x128xf32>
      %34 = arith.mulf %30, %30 : vector<1x128xf32>
      %35 = arith.subf %33, %34 : vector<1x128xf32>
      %cst_25 = arith.constant 0.000000e+00 : f32
      %36 = vector.broadcast %cst_25 : f32 to vector<1x128xf32>
      %37 = arith.maximumf %35, %36 : vector<1x128xf32>
      %cst_26 = arith.constant 9.99999974E-6 : f32
      %38 = vector.broadcast %cst_26 : f32 to vector<1x128xf32>
      %39 = arith.addf %37, %38 : vector<1x128xf32>
      %40 = math.rsqrt %39 : vector<1x128xf32>
      %c0_27 = arith.constant 0 : index
      %c0_28 = arith.constant 0 : index
      %41 = vector.load %arg3[%c0_27, %c0_28] : memref<1x128xf32, #tpu.memory_space<vmem>>, vector<1x128xf32>
      %42 = arith.mulf %41, %40 : vector<1x128xf32>
      %c0_29 = arith.constant 0 : index
      %c0_30 = arith.constant 0 : index
      %43 = vector.load %arg4[%c0_29, %c0_30] : memref<1x128xf32, #tpu.memory_space<vmem>>, vector<1x128xf32>
      %44 = arith.mulf %30, %42 : vector<1x128xf32>
      %45 = arith.subf %43, %44 : vector<1x128xf32>
      %c0_31 = arith.constant 0 : index
      %c0_32 = arith.constant 0 : index
      %46 = vector.load %arg6[%c0_31, %c0_32] : memref<512x128xf32, #tpu.memory_space<vmem>>, vector<512x128xf32>
      %47 = vector.broadcast %42 : vector<1x128xf32> to vector<512x128xf32>
      %48 = arith.mulf %46, %47 : vector<512x128xf32>
      %49 = vector.broadcast %45 : vector<1x128xf32> to vector<512x128xf32>
      %50 = arith.addf %48, %49 : vector<512x128xf32>
      %cst_33 = arith.constant 0.000000e+00 : f32
      %51 = vector.broadcast %cst_33 : f32 to vector<512x128xf32>
      %52 = arith.maximumf %50, %51 : vector<512x128xf32>
      %c0_34 = arith.constant 0 : index
      %c0_35 = arith.constant 0 : index
      %53 = vector.load %arg6[%c0_34, %c0_35] : memref<512x128xf32, #tpu.memory_space<vmem>>, vector<512x128xf32>
      tpu.vector_store %arg6[%c0_34, %c0_35], %52 {strides = array<i32>} : memref<512x128xf32, #tpu.memory_space<vmem>>, vector<512x128xf32>,
    } else {
    }
    return
  }
  func.func @transform_0(%arg0: i32) -> (i32, i32) {
    %c0_i32 = arith.constant 0 : i32
    %c0_i32_0 = arith.constant 0 : i32
    %c0_i32_1 = arith.constant 0 : i32
    return %c0_i32, %c0_i32_0 : i32, i32
  }
  func.func @transform_1(%arg0: i32) -> (i32, i32) {
    %c0_i32 = arith.constant 0 : i32
    %c0_i32_0 = arith.constant 0 : i32
    %c0_i32_1 = arith.constant 0 : i32
    return %c0_i32, %c0_i32_0 : i32, i32
  }
  func.func @transform_2(%arg0: i32) -> (i32, i32) {
    %c0_i32 = arith.constant 0 : i32
    %c0_i32_0 = arith.constant 0 : i32
    %c0_i32_1 = arith.constant 0 : i32
    return %c0_i32, %c0_i32_0 : i32, i32
  }
  func.func @transform_3(%arg0: i32) -> (i32, i32) {
    %c0_i32 = arith.constant 0 : i32
    %c0_i32_0 = arith.constant 0 : i32
    %c0_i32_1 = arith.constant 0 : i32
    return %c0_i32, %c0_i32_0 : i32, i32
  }
  func.func @transform_4(%arg0: i32) -> (i32, i32) {
    %c0_i32 = arith.constant 0 : i32
    %c0_i32_0 = arith.constant 0 : i32
    return %arg0, %c0_i32 : i32, i32
  }
  func.func @transform_5(%arg0: i32) -> (i32, i32) {
    %c0_i32 = arith.constant 0 : i32
    %c0_i32_0 = arith.constant 0 : i32
    %c0_i32_1 = arith.constant 0 : i32
    return %c0_i32, %c0_i32_0 : i32, i32
  }
}

</mosaic_0001>

<llo_original>
// kernel: graph_convolution.1
$region0: #{graph_convolution.1}
  #allocation0 [shape = 'u32[]', space=smem, size = 0x4, offset = 0x4, fixed_abs, tag = 'smem constant byte address 0x4 - core index']
  #allocation1 [shape = 'u32[144,128]{1,0:T(1,128)}', space=vmem, size = 0x12000, scoped, tag = 'internal scratch']
  #allocation2 [shape = 'f32[1,128]{1,0:T(1,128)}', space=vmem, size = 0x200, scoped, tag = 'scratch operand']
  #allocation3 [shape = 'f32[1,128]{1,0:T(1,128)}', space=vmem, size = 0x200, scoped, tag = 'scratch operand']
  %s0 = inlined_call_operand.vmem [shape: bf16[512,64], index: 0, kind: input, shape index: {}]
  %s1 = inlined_call_operand.vmem [shape: bf16[64,128], index: 1, kind: input, shape index: {}]
  %s2 = inlined_call_operand.vmem [shape: f32[1,128], index: 2, kind: input, shape index: {}]
  %s3 = inlined_call_operand.vmem [shape: f32[1,128], index: 3, kind: input, shape index: {}]
  %s4 = inlined_call_operand.hbm [shape: f32[512,512], index: 4, kind: input, shape index: {}]
  %s5 = inlined_call_operand.hbm [shape: f32[512,128], index: 5, kind: output, shape index: {}]
  %s6 = sld [smem:[#allocation0]]
  $region65: #{graph_convolution.1} parent=0
    _
  %s8 = ssub.s32 1, %s6
  %s9 = scalar_select 0, %s8, %s6
  $region1: #{graph_convolution.1} parent=0
    #allocation4 [shape = 'u8[1048576]{0}', space=vmem, size = 0x100000, scoped, tag = 'input window, operand 4']
    #allocation5 [shape = 's32[2]{0}', space=sflag, size = 0x8, scoped, tag = 'scoped memory for graph_convolution.1']
    #allocation6 [shape = 's32[2]{0}', space=sflag, size = 0x8, scoped, tag = 'scoped memory for graph_convolution.1']
    #allocation7 [shape = 'u8[262144]{0}', space=vmem, size = 0x40000, scoped, tag = 'output window, operand 0, single buffered']
    %10 = vsyncpa [#allocation5], 0
    %s11 = scalar_lea.sflag [#allocation5], 1
    %12 = vsyncpa %s11, 0
    %13 = vsyncpa [#allocation6], 0
    loop: start=0, step=1, limit=4
    $region2: #{graph_convolution.1} parent=1 // loop_pre_header
      _
    $region3: #{graph_convolution.1} parent=1 // loop_header
      %s15 = sphi 0, %s19
      %p16 = scmp.ge.s32.totalorder %s15, 4
      %s23 = sphi 0, %s23
      %s25 = sphi 0, %s23
      %s26 = sphi 0, %s25
      %s40 = sphi 0, %s26
      %s44 = sphi 0, %s44
      %s46 = sphi 0, %s44
      %s47 = sphi 0, %s46
      %s61 = sphi 0, %s47
      %s65 = sphi 0, %s65
      %s67 = sphi 0, %s65
      %s68 = sphi 0, %s67
      %s82 = sphi 0, %s68
      %s86 = sphi 0, %s86
      %s88 = sphi 0, %s86
      %s89 = sphi 0, %s88
      %s103 = sphi 0, %s89
      %s109 = sphi 0, %s111
      %s112 = sphi 0, %s109
      %s113 = sphi 0, %s112
      %s129 = sphi 0, %s113
      %s133 = sphi 0, %s133
      %s135 = sphi 0, %s133
      %s136 = sphi 0, %s135
      %s150 = sphi 0, %s136
    $region4: #{graph_convolution.1} parent=1 // loop_header_branch
      %18 = sbr.rel (%p16) target = $region8
    $region5: #{graph_convolution.1} parent=1 // loop_body
      %s20 = ssub.s32 %s15, 1
      %s21 = ssub.s32 %s15, 2
      %s22 = sadd.s32 %s15, 1
      %s24 = sadd.s32 %s23, 1
      %p27 = scmp.eq.s32.totalorder %s15, 1
      %p28 = scmp.ne.s32.totalorder %s23, %s25
      %p29 = scmp.eq.s32.totalorder %s15, 0
      %p30 = por %p28, %p29
      %p31 = scmp.ne.s32.totalorder %s23, %s25
      %p32 = scmp.eq.s32.totalorder %s20, 1
      %p33 = por %p31, %p32
      %p34 = scmp.ne.s32.totalorder %s25, %s26
      %p35 = scmp.eq.s32.totalorder %s20, 0
      %p36 = por %p34, %p35
      %p37 = scmp.ne.s32.totalorder %s25, %s26
      %p38 = scmp.eq.s32.totalorder %s21, 1
      %p39 = por %p37, %p38
      %p41 = scmp.ne.s32.totalorder %s26, %s40
      %p42 = scmp.eq.s32.totalorder %s21, 0
      %p43 = por %p41, %p42
      %s45 = sadd.s32 %s44, 1
      %p48 = scmp.eq.s32.totalorder %s15, 1
      %p49 = scmp.ne.s32.totalorder %s44, %s46
      %p50 = scmp.eq.s32.totalorder %s15, 0
      %p51 = por %p49, %p50
      %p52 = scmp.ne.s32.totalorder %s44, %s46
      %p53 = scmp.eq.s32.totalorder %s20, 1
      %p54 = por %p52, %p53
      %p55 = scmp.ne.s32.totalorder %s46, %s47
      %p56 = scmp.eq.s32.totalorder %s20, 0
      %p57 = por %p55, %p56
      %p58 = scmp.ne.s32.totalorder %s46, %s47
      %p59 = scmp.eq.s32.totalorder %s21, 1
      %p60 = por %p58, %p59
      %p62 = scmp.ne.s32.totalorder %s47, %s61
      %p63 = scmp.eq.s32.totalorder %s21, 0
      %p64 = por %p62, %p63
      %s66 = sadd.s32 %s65, 1
      %p69 = scmp.eq.s32.totalorder %s15, 1
      %p70 = scmp.ne.s32.totalorder %s65, %s67
      %p71 = scmp.eq.s32.totalorder %s15, 0
      %p72 = por %p70, %p71
      %p73 = scmp.ne.s32.totalorder %s65, %s67
      %p74 = scmp.eq.s32.totalorder %s20, 1
      %p75 = por %p73, %p74
      %p76 = scmp.ne.s32.totalorder %s67, %s68
      %p77 = scmp.eq.s32.totalorder %s20, 0
      %p78 = por %p76, %p77
      %p79 = scmp.ne.s32.totalorder %s67, %s68
      %p80 = scmp.eq.s32.totalorder %s21, 1
      %p81 = por %p79, %p80
      %p83 = scmp.ne.s32.totalorder %s68, %s82
      %p84 = scmp.eq.s32.totalorder %s21, 0
      %p85 = por %p83, %p84
      %s87 = sadd.s32 %s86, 1
      %p90 = scmp.eq.s32.totalorder %s15, 1
      %p91 = scmp.ne.s32.totalorder %s86, %s88
      %p92 = scmp.eq.s32.totalorder %s15, 0
      %p93 = por %p91, %p92
      %p94 = scmp.ne.s32.totalorder %s86, %s88
      %p95 = scmp.eq.s32.totalorder %s20, 1
      %p96 = por %p94, %p95
      %p97 = scmp.ne.s32.totalorder %s88, %s89
      %p98 = scmp.eq.s32.totalorder %s20, 0
      %p99 = por %p97, %p98
      %p100 = scmp.ne.s32.totalorder %s88, %s89
      %p101 = scmp.eq.s32.totalorder %s21, 1
      %p102 = por %p100, %p101
      %p104 = scmp.ne.s32.totalorder %s89, %s103
      %p105 = scmp.eq.s32.totalorder %s21, 0
      %p106 = por %p104, %p105
      %s107 = ssub.s32 %s15, %s22
      %p108 = scmp.eq.s32.totalorder %s107, 0
      %s110 = sadd.s32 %s109, 1
      %s111 = scalar_select %p108, %s109, %s110
      %p114 = pneg %p108
      %p115 = scmp.eq.s32.totalorder %s15, 1
      %p116 = por %p114, %p115
      %p117 = scmp.ne.s32.totalorder %s109, %s112
      %p118 = scmp.eq.s32.totalorder %s15, 0
      %p119 = por %p117, %p118
      %p120 = scmp.ne.s32.totalorder %s109, %s112
      %p121 = scmp.eq.s32.totalorder %s20, 1
      %p122 = por %p120, %p121
      %p123 = scmp.ne.s32.totalorder %s112, %s113
      %p124 = scmp.eq.s32.totalorder %s20, 0
      %p125 = por %p123, %p124
      %p126 = scmp.ne.s32.totalorder %s112, %s113
      %p127 = scmp.eq.s32.totalorder %s21, 1
      %p128 = por %p126, %p127
      %p130 = scmp.ne.s32.totalorder %s113, %s129
      %p131 = scmp.eq.s32.totalorder %s21, 0
      %p132 = por %p130, %p131
      %s134 = sadd.s32 %s133, 1
      %p137 = scmp.eq.s32.totalorder %s15, 1
      %p138 = scmp.ne.s32.totalorder %s133, %s135
      %p139 = scmp.eq.s32.totalorder %s15, 0
      %p140 = por %p138, %p139
      %p141 = scmp.ne.s32.totalorder %s133, %s135
      %p142 = scmp.eq.s32.totalorder %s20, 1
      %p143 = por %p141, %p142
      %p144 = scmp.ne.s32.totalorder %s135, %s136
      %p145 = scmp.eq.s32.totalorder %s20, 0
      %p146 = por %p144, %p145
      %p147 = scmp.ne.s32.totalorder %s135, %s136
      %p148 = scmp.eq.s32.totalorder %s21, 1
      %p149 = por %p147, %p148
      %p151 = scmp.ne.s32.totalorder %s136, %s150
      %p152 = scmp.eq.s32.totalorder %s21, 0
      %p153 = por %p151, %p152
      %p154 = scmp.le.s32.totalorder 1, %s15
      %p155 = scmp.lt.s32.totalorder %s15, 3
      %p156 = pnand %p154, %p155
      %p157 = pneg %p156
      // Predicated region
      $region9: #{graph_convolution.1} parent=5 // pred_check
        _
      $region10: #{graph_convolution.1} parent=5 // pred_check_branch
        %159 = sbr.rel (%p156) target = $region12
      $region11: #{graph_convolution.1} parent=5 // pred_region
        %s160 = ssub.s32 %s15, 1
        // Predicated region
        $region13: #{graph_convolution.1} parent=11 // pred_check
          %p161 = pneg %p36
        $region14: #{graph_convolution.1} parent=11 // pred_check_branch
          %163 = sbr.rel (%p161) target = $region16
        $region15: #{graph_convolution.1} parent=11 // pred_region
          _
        $region16: #{graph_convolution.1} parent=11 // pred_fallthru
          _
        // Predicated region
        $region17: #{graph_convolution.1} parent=11 // pred_check
          %p164 = pneg %p57
        $region18: #{graph_convolution.1} parent=11 // pred_check_branch
          %166 = sbr.rel (%p164) target = $region20
        $region19: #{graph_convolution.1} parent=11 // pred_region
          _
        $region20: #{graph_convolution.1} parent=11 // pred_fallthru
          _
        // Predicated region
        $region21: #{graph_convolution.1} parent=11 // pred_check
          %p167 = pneg %p78
        $region22: #{graph_convolution.1} parent=11 // pred_check_branch
          %169 = sbr.rel (%p167) target = $region24
        $region23: #{graph_convolution.1} parent=11 // pred_region
          _
        $region24: #{graph_convolution.1} parent=11 // pred_fallthru
          _
        // Predicated region
        $region25: #{graph_convolution.1} parent=11 // pred_check
          %p170 = pneg %p99
        $region26: #{graph_convolution.1} parent=11 // pred_check_branch
          %172 = sbr.rel (%p170) target = $region28
        $region27: #{graph_convolution.1} parent=11 // pred_region
          _
        $region28: #{graph_convolution.1} parent=11 // pred_fallthru
          _
      $region12: #{graph_convolution.1} parent=5 // pred_fallthru
        _
      %p173 = scmp.lt.s32.totalorder %s15, 2
      // Predicated region
      $region29: #{graph_convolution.1} parent=5 // pred_check
        %p174 = pneg %p173
      $region30: #{graph_convolution.1} parent=5 // pred_check_branch
        %176 = sbr.rel (%p174) target = $region32
      $region31: #{graph_convolution.1} parent=5 // pred_region
        // Predicated region
        $region33: #{graph_convolution.1} parent=31 // pred_check
          %p177 = pneg %p119
        $region34: #{graph_convolution.1} parent=31 // pred_check_branch
          %179 = sbr.rel (%p177) target = $region36
        $region35: #{graph_convolution.1} parent=31 // pred_region
          %s180 = sand.u32 %s109, 1
          %s181 = scalar_lea.sflag [#allocation5], %s180
          %s182 = sand.u32 %s109, 1
          %s183 = smul.addr %s182, 1024
          %s184 = scalar_lea.vmem [#allocation4], %s183
          %s185 = smul.u32 32, %s15
          %s187 = ssub.s32 16384, 16384
          %188 = vsyncadd %s181, %s187
          %s189 = smul.addr %s185, 4
          %s190 = smul.addr %s189, 128
          %s191 = scalar_lea.hbm %s4, %s190
          %s192 = sshll.u32 %s184, 4
          %s193 = int_to_ptr.vmem [resolvable:$true] %s192
          %198 = dma.hbm_to_vmem [thread:$0]  %s191, 16384, %s193, %s181, 512, 512, 32
        $region36: #{graph_convolution.1} parent=31 // pred_fallthru
          _
      $region32: #{graph_convolution.1} parent=5 // pred_fallthru
        _
      %p199 = scmp.le.s32.totalorder 1, %s15
      %p200 = scmp.lt.s32.totalorder %s15, 3
      %p201 = pnand %p199, %p200
      %p202 = pneg %p201
      // Predicated region
      $region37: #{graph_convolution.1} parent=5 // pred_check
        _
      $region38: #{graph_convolution.1} parent=5 // pred_check_branch
        %204 = sbr.rel (%p201) target = $region40
      $region39: #{graph_convolution.1} parent=5 // pred_region
        %s205 = ssub.s32 %s15, 1
        %s206 = sand.u32 %s112, 1
        %s207 = scalar_lea.sflag [#allocation5], %s206
        %s208 = sand.u32 %s112, 1
        %s209 = smul.addr %s208, 1024
        %s210 = scalar_lea.vmem [#allocation4], %s209
        // Predicated region
        $region41: #{graph_convolution.1} parent=39 // pred_check
          %p211 = pneg %p125
        $region42: #{graph_convolution.1} parent=39 // pred_check_branch
          %213 = sbr.rel (%p211) target = $region44
        $region43: #{graph_convolution.1} parent=39 // pred_region
          %214 = dma.done %s207, 16384
        $region44: #{graph_convolution.1} parent=39 // pred_fallthru
          _
        %p215 = pneg %p36
        %p216 = pneg %p33
        %p217 = pneg %p57
        %p218 = pneg %p54
        %p219 = pneg %p78
        %p220 = pneg %p75
        %p221 = pneg %p99
        %p222 = pneg %p96
        %s223 = sand.u32 %s112, 1
        %s224 = scalar_lea.sflag [#allocation5], %s223
        %s225 = sand.u32 %s112, 1
        %s226 = smul.addr %s225, 1024
        %s227 = scalar_lea.vmem [#allocation4], %s226
        %p228 = pneg %p125
        %p229 = pneg %p122
        %p230 = pneg %p146
        %p231 = pneg %p143
        %s232 = smul.u32 32, %s20
        %p234 = scmp.eq.s32.totalorder %s20, 0
        // Predicated region
        $region45: #{graph_convolution.1} parent=39 // pred_check
          %p235 = pneg %p234
        $region46: #{graph_convolution.1} parent=39 // pred_check_branch
          %237 = sbr.rel (%p235) target = $region48
        $region47: #{graph_convolution.1} parent=39 // pred_region
          %238 = vst [vmem:[#allocation2] sm:$0x1] 0.0
          %239 = vst [vmem:[#allocation3] sm:$0x1] 0.0
        $region48: #{graph_convolution.1} parent=39 // pred_fallthru
          _
        %v240 = vld [vmem:[%s210] sm:$0xff]
        %v241 = vld [vmem:[%s210 + $0x8] sm:$0xff]
        %v242 = vld [vmem:[%s210 + $0x10] sm:$0xff]
        %v243 = vld [vmem:[%s210 + $0x18] sm:$0xff]
        %v244 = vld [vmem:[%s210 + $0x20] sm:$0xff]
        %v245 = vld [vmem:[%s210 + $0x28] sm:$0xff]
        %v246 = vld [vmem:[%s210 + $0x30] sm:$0xff]
        %v247 = vld [vmem:[%s210 + $0x38] sm:$0xff]
        %v248 = vld [vmem:[%s210 + $0x40] sm:$0xff]
        %v249 = vld [vmem:[%s210 + $0x48] sm:$0xff]
        %v250 = vld [vmem:[%s210 + $0x50] sm:$0xff]
        %v251 = vld [vmem:[%s210 + $0x58] sm:$0xff]
        %v252 = vld [vmem:[%s210 + $0x60] sm:$0xff]
        %v253 = vld [vmem:[%s210 + $0x68] sm:$0xff]
        %v254 = vld [vmem:[%s210 + $0x70] sm:$0xff]
        %v255 = vld [vmem:[%s210 + $0x78] sm:$0xff]
        %v256 = vld [vmem:[%s210 + $0x80] sm:$0xff]
        %v257 = vld [vmem:[%s210 + $0x88] sm:$0xff]
        %v258 = vld [vmem:[%s210 + $0x90] sm:$0xff]
        %v259 = vld [vmem:[%s210 + $0x98] sm:$0xff]
        %v260 = vld [vmem:[%s210 + $0xa0] sm:$0xff]
        %v261 = vld [vmem:[%s210 + $0xa8] sm:$0xff]
        %v262 = vld [vmem:[%s210 + $0xb0] sm:$0xff]
        %v263 = vld [vmem:[%s210 + $0xb8] sm:$0xff]
        %v264 = vld [vmem:[%s210 + $0xc0] sm:$0xff]
        %v265 = vld [vmem:[%s210 + $0xc8] sm:$0xff]
        %v266 = vld [vmem:[%s210 + $0xd0] sm:$0xff]
        %v267 = vld [vmem:[%s210 + $0xd8] sm:$0xff]
        %v268 = vld [vmem:[%s210 + $0xe0] sm:$0xff]
        %v269 = vld [vmem:[%s210 + $0xe8] sm:$0xff]
        %v270 = vld [vmem:[%s210 + $0xf0] sm:$0xff]
        %v271 = vld [vmem:[%s210 + $0xf8] sm:$0xff]
        %v272 = vld [vmem:[%s210 + $0x100] sm:$0xff]
        %v273 = vld [vmem:[%s210 + $0x108] sm:$0xff]
        %v274 = vld [vmem:[%s210 + $0x110] sm:$0xff]
        %v275 = vld [vmem:[%s210 + $0x118] sm:$0xff]
        %v276 = vld [vmem:[%s210 + $0x120] sm:$0xff]
        %v277 = vld [vmem:[%s210 + $0x128] sm:$0xff]
        %v278 = vld [vmem:[%s210 + $0x130] sm:$0xff]
        %v279 = vld [vmem:[%s210 + $0x138] sm:$0xff]
        %v280 = vld [vmem:[%s210 + $0x140] sm:$0xff]
        %v281 = vld [vmem:[%s210 + $0x148] sm:$0xff]
        %v282 = vld [vmem:[%s210 + $0x150] sm:$0xff]
        %v283 = vld [vmem:[%s210 + $0x158] sm:$0xff]
        %v284 = vld [vmem:[%s210 + $0x160] sm:$0xff]
        %v285 = vld [vmem:[%s210 + $0x168] sm:$0xff]
        %v286 = vld [vmem:[%s210 + $0x170] sm:$0xff]
        %v287 = vld [vmem:[%s210 + $0x178] sm:$0xff]
        %v288 = vld [vmem:[%s210 + $0x180] sm:$0xff]
        %v289 = vld [vmem:[%s210 + $0x188] sm:$0xff]
        %v290 = vld [vmem:[%s210 + $0x190] sm:$0xff]
        %v291 = vld [vmem:[%s210 + $0x198] sm:$0xff]
        %v292 = vld [vmem:[%s210 + $0x1a0] sm:$0xff]
        %v293 = vld [vmem:[%s210 + $0x1a8] sm:$0xff]
        %v294 = vld [vmem:[%s210 + $0x1b0] sm:$0xff]
        %v295 = vld [vmem:[%s210 + $0x1b8] sm:$0xff]
        %v296 = vld [vmem:[%s210 + $0x1c0] sm:$0xff]
        %v297 = vld [vmem:[%s210 + $0x1c8] sm:$0xff]
        %v298 = vld [vmem:[%s210 + $0x1d0] sm:$0xff]
        %v299 = vld [vmem:[%s210 + $0x1d8] sm:$0xff]
        %v300 = vld [vmem:[%s210 + $0x1e0] sm:$0xff]
        %v301 = vld [vmem:[%s210 + $0x1e8] sm:$0xff]
        %v302 = vld [vmem:[%s210 + $0x1f0] sm:$0xff]
        %v303 = vld [vmem:[%s210 + $0x1f8] sm:$0xff]
        %v304 = vld [vmem:[%s210 + $0x200] sm:$0xff]
        %v305 = vld [vmem:[%s210 + $0x208] sm:$0xff]
        %v306 = vld [vmem:[%s210 + $0x210] sm:$0xff]
        %v307 = vld [vmem:[%s210 + $0x218] sm:$0xff]
        %v308 = vld [vmem:[%s210 + $0x220] sm:$0xff]
        %v309 = vld [vmem:[%s210 + $0x228] sm:$0xff]
        %v310 = vld [vmem:[%s210 + $0x230] sm:$0xff]
        %v311 = vld [vmem:[%s210 + $0x238] sm:$0xff]
        %v312 = vld [vmem:[%s210 + $0x240] sm:$0xff]
        %v313 = vld [vmem:[%s210 + $0x248] sm:$0xff]
        %v314 = vld [vmem:[%s210 + $0x250] sm:$0xff]
        %v315 = vld [vmem:[%s210 + $0x258] sm:$0xff]
        %v316 = vld [vmem:[%s210 + $0x260] sm:$0xff]
        %v317 = vld [vmem:[%s210 + $0x268] sm:$0xff]
        %v318 = vld [vmem:[%s210 + $0x270] sm:$0xff]
        %v319 = vld [vmem:[%s210 + $0x278] sm:$0xff]
        %v320 = vld [vmem:[%s210 + $0x280] sm:$0xff]
        %v321 = vld [vmem:[%s210 + $0x288] sm:$0xff]
        %v322 = vld [vmem:[%s210 + $0x290] sm:$0xff]
        %v323 = vld [vmem:[%s210 + $0x298] sm:$0xff]
        %v324 = vld [vmem:[%s210 + $0x2a0] sm:$0xff]
        %v325 = vld [vmem:[%s210 + $0x2a8] sm:$0xff]
        %v326 = vld [vmem:[%s210 + $0x2b0] sm:$0xff]
        %v327 = vld [vmem:[%s210 + $0x2b8] sm:$0xff]
        %v328 = vld [vmem:[%s210 + $0x2c0] sm:$0xff]
        %v329 = vld [vmem:[%s210 + $0x2c8] sm:$0xff]
        %v330 = vld [vmem:[%s210 + $0x2d0] sm:$0xff]
        %v331 = vld [vmem:[%s210 + $0x2d8] sm:$0xff]
        %v332 = vld [vmem:[%s210 + $0x2e0] sm:$0xff]
        %v333 = vld [vmem:[%s210 + $0x2e8] sm:$0xff]
        %v334 = vld [vmem:[%s210 + $0x2f0] sm:$0xff]
        %v335 = vld [vmem:[%s210 + $0x2f8] sm:$0xff]
        %v336 = vld [vmem:[%s210 + $0x300] sm:$0xff]
        %v337 = vld [vmem:[%s210 + $0x308] sm:$0xff]
        %v338 = vld [vmem:[%s210 + $0x310] sm:$0xff]
        %v339 = vld [vmem:[%s210 + $0x318] sm:$0xff]
        %v340 = vld [vmem:[%s210 + $0x320] sm:$0xff]
        %v341 = vld [vmem:[%s210 + $0x328] sm:$0xff]
        %v342 = vld [vmem:[%s210 + $0x330] sm:$0xff]
        %v343 = vld [vmem:[%s210 + $0x338] sm:$0xff]
        %v344 = vld [vmem:[%s210 + $0x340] sm:$0xff]
        %v345 = vld [vmem:[%s210 + $0x348] sm:$0xff]
        %v346 = vld [vmem:[%s210 + $0x350] sm:$0xff]
        %v347 = vld [vmem:[%s210 + $0x358] sm:$0xff]
        %v348 = vld [vmem:[%s210 + $0x360] sm:$0xff]
        %v349 = vld [vmem:[%s210 + $0x368] sm:$0xff]
        %v350 = vld [vmem:[%s210 + $0x370] sm:$0xff]
        %v351 = vld [vmem:[%s210 + $0x378] sm:$0xff]
        %v352 = vld [vmem:[%s210 + $0x380] sm:$0xff]
        %v353 = vld [vmem:[%s210 + $0x388] sm:$0xff]
        %v354 = vld [vmem:[%s210 + $0x390] sm:$0xff]
        %v355 = vld [vmem:[%s210 + $0x398] sm:$0xff]
        %v356 = vld [vmem:[%s210 + $0x3a0] sm:$0xff]
        %v357 = vld [vmem:[%s210 + $0x3a8] sm:$0xff]
        %v358 = vld [vmem:[%s210 + $0x3b0] sm:$0xff]
        %v359 = vld [vmem:[%s210 + $0x3b8] sm:$0xff]
        %v360 = vld [vmem:[%s210 + $0x3c0] sm:$0xff]
        %v361 = vld [vmem:[%s210 + $0x3c8] sm:$0xff]
        %v362 = vld [vmem:[%s210 + $0x3d0] sm:$0xff]
        %v363 = vld [vmem:[%s210 + $0x3d8] sm:$0xff]
        %v364 = vld [vmem:[%s210 + $0x3e0] sm:$0xff]
        %v365 = vld [vmem:[%s210 + $0x3e8] sm:$0xff]
        %v366 = vld [vmem:[%s210 + $0x3f0] sm:$0xff]
        %v367 = vld [vmem:[%s210 + $0x3f8] sm:$0xff]
        %v368 = vpack.c.bf16 %v244, %v240
        %v369 = vpack.c.bf16 %v245, %v241
        %v370 = vpack.c.bf16 %v246, %v242
        %v371 = vpack.c.bf16 %v247, %v243
        %v372 = vpack.c.bf16 %v252, %v248
        %v373 = vpack.c.bf16 %v253, %v249
        %v374 = vpack.c.bf16 %v254, %v250
        %v375 = vpack.c.bf16 %v255, %v251
        %v376 = vpack.c.bf16 %v260, %v256
        %v377 = vpack.c.bf16 %v261, %v257
        %v378 = vpack.c.bf16 %v262, %v258
        %v379 = vpack.c.bf16 %v263, %v259
        %v380 = vpack.c.bf16 %v268, %v264
        %v381 = vpack.c.bf16 %v269, %v265
        %v382 = vpack.c.bf16 %v270, %v266
        %v383 = vpack.c.bf16 %v271, %v267
        %v384 = vpack.c.bf16 %v276, %v272
        %v385 = vpack.c.bf16 %v277, %v273
        %v386 = vpack.c.bf16 %v278, %v274
        %v387 = vpack.c.bf16 %v279, %v275
        %v388 = vpack.c.bf16 %v284, %v280
        %v389 = vpack.c.bf16 %v285, %v281
        %v390 = vpack.c.bf16 %v286, %v282
        %v391 = vpack.c.bf16 %v287, %v283
        %v392 = vpack.c.bf16 %v292, %v288
        %v393 = vpack.c.bf16 %v293, %v289
        %v394 = vpack.c.bf16 %v294, %v290
        %v395 = vpack.c.bf16 %v295, %v291
        %v396 = vpack.c.bf16 %v300, %v296
        %v397 = vpack.c.bf16 %v301, %v297
        %v398 = vpack.c.bf16 %v302, %v298
        %v399 = vpack.c.bf16 %v303, %v299
        %v400 = vpack.c.bf16 %v308, %v304
        %v401 = vpack.c.bf16 %v309, %v305
        %v402 = vpack.c.bf16 %v310, %v306
        %v403 = vpack.c.bf16 %v311, %v307
        %v404 = vpack.c.bf16 %v316, %v312
        %v405 = vpack.c.bf16 %v317, %v313
        %v406 = vpack.c.bf16 %v318, %v314
        %v407 = vpack.c.bf16 %v319, %v315
        %v408 = vpack.c.bf16 %v324, %v320
        %v409 = vpack.c.bf16 %v325, %v321
        %v410 = vpack.c.bf16 %v326, %v322
        %v411 = vpack.c.bf16 %v327, %v323
        %v412 = vpack.c.bf16 %v332, %v328
        %v413 = vpack.c.bf16 %v333, %v329
        %v414 = vpack.c.bf16 %v334, %v330
        %v415 = vpack.c.bf16 %v335, %v331
        %v416 = vpack.c.bf16 %v340, %v336
        %v417 = vpack.c.bf16 %v341, %v337
        %v418 = vpack.c.bf16 %v342, %v338
        %v419 = vpack.c.bf16 %v343, %v339
        %v420 = vpack.c.bf16 %v348, %v344
        %v421 = vpack.c.bf16 %v349, %v345
        %v422 = vpack.c.bf16 %v350, %v346
        %v423 = vpack.c.bf16 %v351, %v347
        %v424 = vpack.c.bf16 %v356, %v352
        %v425 = vpack.c.bf16 %v357, %v353
        %v426 = vpack.c.bf16 %v358, %v354
        %v427 = vpack.c.bf16 %v359, %v355
        %v428 = vpack.c.bf16 %v364, %v360
        %v429 = vpack.c.bf16 %v365, %v361
        %v430 = vpack.c.bf16 %v366, %v362
        %v431 = vpack.c.bf16 %v367, %v363
        %v432 = vld [vmem:[%s0] sm:$0xf]
        %v433 = vld [vmem:[%s0 + $0x4] sm:$0xf]
        %v434 = vld [vmem:[%s0 + $0x8] sm:$0xf]
        %v435 = vld [vmem:[%s0 + $0xc] sm:$0xf]
        %v436 = vld [vmem:[%s0 + $0x10] sm:$0xf]
        %v437 = vld [vmem:[%s0 + $0x14] sm:$0xf]
        %v438 = vld [vmem:[%s0 + $0x18] sm:$0xf]
        %v439 = vld [vmem:[%s0 + $0x1c] sm:$0xf]
        %v440 = vld [vmem:[%s0 + $0x20] sm:$0xf]
        %v441 = vld [vmem:[%s0 + $0x24] sm:$0xf]
        %v442 = vld [vmem:[%s0 + $0x28] sm:$0xf]
        %v443 = vld [vmem:[%s0 + $0x2c] sm:$0xf]
        %v444 = vld [vmem:[%s0 + $0x30] sm:$0xf]
        %v445 = vld [vmem:[%s0 + $0x34] sm:$0xf]
        %v446 = vld [vmem:[%s0 + $0x38] sm:$0xf]
        %v447 = vld [vmem:[%s0 + $0x3c] sm:$0xf]
        %v448 = vld [vmem:[%s0 + $0x40] sm:$0xf]
        %v449 = vld [vmem:[%s0 + $0x44] sm:$0xf]
        %v450 = vld [vmem:[%s0 + $0x48] sm:$0xf]
        %v451 = vld [vmem:[%s0 + $0x4c] sm:$0xf]
        %v452 = vld [vmem:[%s0 + $0x50] sm:$0xf]
        %v453 = vld [vmem:[%s0 + $0x54] sm:$0xf]
        %v454 = vld [vmem:[%s0 + $0x58] sm:$0xf]
        %v455 = vld [vmem:[%s0 + $0x5c] sm:$0xf]
        %v456 = vld [vmem:[%s0 + $0x60] sm:$0xf]
        %v457 = vld [vmem:[%s0 + $0x64] sm:$0xf]
        %v458 = vld [vmem:[%s0 + $0x68] sm:$0xf]
        %v459 = vld [vmem:[%s0 + $0x6c] sm:$0xf]
        %v460 = vld [vmem:[%s0 + $0x70] sm:$0xf]
        %v461 = vld [vmem:[%s0 + $0x74] sm:$0xf]
        %v462 = vld [vmem:[%s0 + $0x78] sm:$0xf]
        %v463 = vld [vmem:[%s0 + $0x7c] sm:$0xf]
        %v464 = vld [vmem:[%s0 + $0x80] sm:$0xf]
        %v465 = vld [vmem:[%s0 + $0x84] sm:$0xf]
        %v466 = vld [vmem:[%s0 + $0x88] sm:$0xf]
        %v467 = vld [vmem:[%s0 + $0x8c] sm:$0xf]
        %v468 = vld [vmem:[%s0 + $0x90] sm:$0xf]
        %v469 = vld [vmem:[%s0 + $0x94] sm:$0xf]
        %v470 = vld [vmem:[%s0 + $0x98] sm:$0xf]
        %v471 = vld [vmem:[%s0 + $0x9c] sm:$0xf]
        %v472 = vld [vmem:[%s0 + $0xa0] sm:$0xf]
        %v473 = vld [vmem:[%s0 + $0xa4] sm:$0xf]
        %v474 = vld [vmem:[%s0 + $0xa8] sm:$0xf]
        %v475 = vld [vmem:[%s0 + $0xac] sm:$0xf]
        %v476 = vld [vmem:[%s0 + $0xb0] sm:$0xf]
        %v477 = vld [vmem:[%s0 + $0xb4] sm:$0xf]
        %v478 = vld [vmem:[%s0 + $0xb8] sm:$0xf]
        %v479 = vld [vmem:[%s0 + $0xbc] sm:$0xf]
        %v480 = vld [vmem:[%s0 + $0xc0] sm:$0xf]
        %v481 = vld [vmem:[%s0 + $0xc4] sm:$0xf]
        %v482 = vld [vmem:[%s0 + $0xc8] sm:$0xf]
        %v483 = vld [vmem:[%s0 + $0xcc] sm:$0xf]
        %v484 = vld [vmem:[%s0 + $0xd0] sm:$0xf]
        %v485 = vld [vmem:[%s0 + $0xd4] sm:$0xf]
        %v486 = vld [vmem:[%s0 + $0xd8] sm:$0xf]
        %v487 = vld [vmem:[%s0 + $0xdc] sm:$0xf]
        %v488 = vld [vmem:[%s0 + $0xe0] sm:$0xf]
        %v489 = vld [vmem:[%s0 + $0xe4] sm:$0xf]
        %v490 = vld [vmem:[%s0 + $0xe8] sm:$0xf]
        %v491 = vld [vmem:[%s0 + $0xec] sm:$0xf]
        %v492 = vld [vmem:[%s0 + $0xf0] sm:$0xf]
        %v493 = vld [vmem:[%s0 + $0xf4] sm:$0xf]
        %v494 = vld [vmem:[%s0 + $0xf8] sm:$0xf]
        %v495 = vld [vmem:[%s0 + $0xfc] sm:$0xf]
        %v560 = vunpack.c.l.b16 %v432
        %v561 = vunpack.c.l.b16 %v433
        %v562 = vunpack.c.l.b16 %v434
        %v563 = vunpack.c.l.b16 %v435
        %v564 = vunpack.c.l.b16 %v436
        %v565 = vunpack.c.l.b16 %v437
        %v566 = vunpack.c.l.b16 %v438
        %v567 = vunpack.c.l.b16 %v439
        %v568 = vunpack.c.l.b16 %v440
        %v569 = vunpack.c.l.b16 %v441
        %v570 = vunpack.c.l.b16 %v442
        %v571 = vunpack.c.l.b16 %v443
        %v572 = vunpack.c.l.b16 %v444
        %v573 = vunpack.c.l.b16 %v445
        %v574 = vunpack.c.l.b16 %v446
        %v575 = vunpack.c.l.b16 %v447
        %v576 = vunpack.c.l.b16 %v448
        %v577 = vunpack.c.l.b16 %v449
        %v578 = vunpack.c.l.b16 %v450
        %v579 = vunpack.c.l.b16 %v451
        %v580 = vunpack.c.l.b16 %v452
        %v581 = vunpack.c.l.b16 %v453
        %v582 = vunpack.c.l.b16 %v454
        %v583 = vunpack.c.l.b16 %v455
        %v584 = vunpack.c.l.b16 %v456
        %v585 = vunpack.c.l.b16 %v457
        %v586 = vunpack.c.l.b16 %v458
        %v587 = vunpack.c.l.b16 %v459
        %v588 = vunpack.c.l.b16 %v460
        %v589 = vunpack.c.l.b16 %v461
        %v590 = vunpack.c.l.b16 %v462
        %v591 = vunpack.c.l.b16 %v463
        %v592 = vunpack.c.l.b16 %v464
        %v593 = vunpack.c.l.b16 %v465
        %v594 = vunpack.c.l.b16 %v466
        %v595 = vunpack.c.l.b16 %v467
        %v596 = vunpack.c.l.b16 %v468
        %v597 = vunpack.c.l.b16 %v469
        %v598 = vunpack.c.l.b16 %v470
        %v599 = vunpack.c.l.b16 %v471
        %v600 = vunpack.c.l.b16 %v472
        %v601 = vunpack.c.l.b16 %v473
        %v602 = vunpack.c.l.b16 %v474
        %v603 = vunpack.c.l.b16 %v475
        %v604 = vunpack.c.l.b16 %v476
        %v605 = vunpack.c.l.b16 %v477
        %v606 = vunpack.c.l.b16 %v478
        %v607 = vunpack.c.l.b16 %v479
        %v608 = vunpack.c.l.b16 %v480
        %v609 = vunpack.c.l.b16 %v481
        %v610 = vunpack.c.l.b16 %v482
        %v611 = vunpack.c.l.b16 %v483
        %v612 = vunpack.c.l.b16 %v484
        %v613 = vunpack.c.l.b16 %v485
        %v614 = vunpack.c.l.b16 %v486
        %v615 = vunpack.c.l.b16 %v487
        %v616 = vunpack.c.l.b16 %v488
        %v617 = vunpack.c.l.b16 %v489
        %v618 = vunpack.c.l.b16 %v490
        %v619 = vunpack.c.l.b16 %v491
        %v620 = vunpack.c.l.b16 %v492
        %v621 = vunpack.c.l.b16 %v493
        %v622 = vunpack.c.l.b16 %v494
        %v623 = vunpack.c.l.b16 %v495
        %v624 = vpack.c.b16 %v561, %v560
        %v625 = vpack.c.b16 %v563, %v562
        %v626 = vpack.c.b16 %v565, %v564
        %v627 = vpack.c.b16 %v567, %v566
        %v628 = vpack.c.b16 %v569, %v568
        %v629 = vpack.c.b16 %v571, %v570
        %v630 = vpack.c.b16 %v573, %v572
        %v631 = vpack.c.b16 %v575, %v574
        %v632 = vpack.c.b16 %v577, %v576
        %v633 = vpack.c.b16 %v579, %v578
        %v634 = vpack.c.b16 %v581, %v580
        %v635 = vpack.c.b16 %v583, %v582
        %v636 = vpack.c.b16 %v585, %v584
        %v637 = vpack.c.b16 %v587, %v586
        %v638 = vpack.c.b16 %v589, %v588
        %v639 = vpack.c.b16 %v591, %v590
        %v640 = vpack.c.b16 %v593, %v592
        %v641 = vpack.c.b16 %v595, %v594
        %v642 = vpack.c.b16 %v597, %v596
        %v643 = vpack.c.b16 %v599, %v598
        %v644 = vpack.c.b16 %v601, %v600
        %v645 = vpack.c.b16 %v603, %v602
        %v646 = vpack.c.b16 %v605, %v604
        %v647 = vpack.c.b16 %v607, %v606
        %v648 = vpack.c.b16 %v609, %v608
        %v649 = vpack.c.b16 %v611, %v610
        %v650 = vpack.c.b16 %v613, %v612
        %v651 = vpack.c.b16 %v615, %v614
        %v652 = vpack.c.b16 %v617, %v616
        %v653 = vpack.c.b16 %v619, %v618
        %v654 = vpack.c.b16 %v621, %v620
        %v655 = vpack.c.b16 %v623, %v622
        %688 = vmatprep.subr.bf16.mxu0 0
        %689 = vmatpush1.bf16.msra.mxu0 %v624
        %690 = vmatprep.subr.bf16.mxu0 0
        %691 = vmatpush1.bf16.msra.mxu0 %v625
        %692 = vmatprep.subr.bf16.mxu0 0
        %693 = vmatpush1.bf16.msra.mxu0 %v626
        %694 = vmatprep.subr.bf16.mxu0 0
        %695 = vmatpush1.bf16.msra.mxu0 %v627
        %696 = vmatprep.subr.bf16.mxu0 0
        %697 = vmatpush1.bf16.msra.mxu0 %v628
        %698 = vmatprep.subr.bf16.mxu0 0
        %699 = vmatpush1.bf16.msra.mxu0 %v629
        %700 = vmatprep.subr.bf16.mxu0 0
        %701 = vmatpush1.bf16.msra.mxu0 %v630
        %702 = vmatprep.subr.bf16.mxu0 0
        %703 = vmatpush1.bf16.msra.mxu0 %v631
        %704 = vmatprep.subr.bf16.mxu0 0
        %705 = vmatpush1.bf16.msra.mxu0 %v632
        %706 = vmatprep.subr.bf16.mxu0 0
        %707 = vmatpush1.bf16.msra.mxu0 %v633
        %708 = vmatprep.subr.bf16.mxu0 0
        %709 = vmatpush1.bf16.msra.mxu0 %v634
        %710 = vmatprep.subr.bf16.mxu0 0
        %711 = vmatpush1.bf16.msra.mxu0 %v635
        %712 = vmatprep.subr.bf16.mxu0 0
        %713 = vmatpush1.bf16.msra.mxu0 %v636
        %714 = vmatprep.subr.bf16.mxu0 0
        %715 = vmatpush1.bf16.msra.mxu0 %v637
        %716 = vmatprep.subr.bf16.mxu0 0
        %717 = vmatpush1.bf16.msra.mxu0 %v638
        %718 = vmatprep.subr.bf16.mxu0 0
        %719 = vmatpush1.bf16.msra.mxu0 %v639
        %720 = vmatprep.mubr.bf16.mxu0 %v369
        %721 = vmatmul.mubr.bf16.gmra.mrb[0].mxu0 %v368
        %v722 = vpop.f32.mrb[0].mxu0
        %v723 = vadd.f32 0.0, %v722
        %v724 = vpop.f32.mrb[0].mxu0
        %v725 = vpop.f32.mrb[0].mxu0
        %v726 = vadd.f32 0.0, %v725
        %v727 = vpop.f32.mrb[0].mxu0
        %728 = vmatprep.mubr.bf16.mxu0 %v373
        %729 = vmatmul.mubr.bf16.gmra.mrb[0].mxu0 %v372
        %v730 = vpop.f32.mrb[0].mxu0
        %v731 = vadd.f32 0.0, %v730
        %v732 = vpop.f32.mrb[0].mxu0
        %v733 = vpop.f32.mrb[0].mxu0
        %v734 = vadd.f32 0.0, %v733
        %v735 = vpop.f32.mrb[0].mxu0
        %736 = vmatprep.mubr.bf16.mxu0 %v377
        %737 = vmatmul.mubr.bf16.gmra.mrb[0].mxu0 %v376
        %v738 = vpop.f32.mrb[0].mxu0
        %v739 = vadd.f32 0.0, %v738
        %v740 = vpop.f32.mrb[0].mxu0
        %v741 = vpop.f32.mrb[0].mxu0
        %v742 = vadd.f32 0.0, %v741
        %v743 = vpop.f32.mrb[0].mxu0
        %744 = vmatprep.mubr.bf16.mxu0 %v381
        %745 = vmatmul.mubr.bf16.gmra.mrb[0].mxu0 %v380
        %v746 = vpop.f32.mrb[0].mxu0
        %v747 = vadd.f32 0.0, %v746
        %v748 = vpop.f32.mrb[0].mxu0
        %v749 = vpop.f32.mrb[0].mxu0
        %v750 = vadd.f32 0.0, %v749
        %v751 = vpop.f32.mrb[0].mxu0
        %752 = vmatprep.mubr.bf16.mxu0 %v385
        %753 = vmatmul.mubr.bf16.gmra.mrb[0].mxu0 %v384
        %v754 = vpop.f32.mrb[0].mxu0
        %v755 = vadd.f32 0.0, %v754
        %v756 = vpop.f32.mrb[0].mxu0
        %v757 = vpop.f32.mrb[0].mxu0
        %v758 = vadd.f32 0.0, %v757
        %v759 = vpop.f32.mrb[0].mxu0
        %760 = vmatprep.mubr.bf16.mxu0 %v389
        %761 = vmatmul.mubr.bf16.gmra.mrb[0].mxu0 %v388
        %v762 = vpop.f32.mrb[0].mxu0
        %v763 = vadd.f32 0.0, %v762
        %v764 = vpop.f32.mrb[0].mxu0
        %v765 = vpop.f32.mrb[0].mxu0
        %v766 = vadd.f32 0.0, %v765
        %v767 = vpop.f32.mrb[0].mxu0
        %768 = vmatprep.mubr.bf16.mxu0 %v393
        %769 = vmatmul.mubr.bf16.gmra.mrb[0].mxu0 %v392
        %v770 = vpop.f32.mrb[0].mxu0
        %v771 = vadd.f32 0.0, %v770
        %v772 = vpop.f32.mrb[0].mxu0
        %v773 = vpop.f32.mrb[0].mxu0
        %v774 = vadd.f32 0.0, %v773
        %v775 = vpop.f32.mrb[0].mxu0
        %776 = vmatprep.mubr.bf16.mxu0 %v397
        %777 = vmatmul.mubr.bf16.gmra.mrb[0].mxu0 %v396
        %v778 = vpop.f32.mrb[0].mxu0
        %v779 = vadd.f32 0.0, %v778
        %v780 = vpop.f32.mrb[0].mxu0
        %v781 = vpop.f32.mrb[0].mxu0
        %v782 = vadd.f32 0.0, %v781
        %v783 = vpop.f32.mrb[0].mxu0
        %784 = vmatprep.mubr.bf16.mxu0 %v401
        %785 = vmatmul.mubr.bf16.gmra.mrb[0].mxu0 %v400
        %v786 = vpop.f32.mrb[0].mxu0
        %v787 = vadd.f32 0.0, %v786
        %v788 = vpop.f32.mrb[0].mxu0
        %v789 = vpop.f32.mrb[0].mxu0
        %v790 = vadd.f32 0.0, %v789
        %v791 = vpop.f32.mrb[0].mxu0
        %792 = vmatprep.mubr.bf16.mxu0 %v405
        %793 = vmatmul.mubr.bf16.gmra.mrb[0].mxu0 %v404
        %v794 = vpop.f32.mrb[0].mxu0
        %v795 = vadd.f32 0.0, %v794
        %v796 = vpop.f32.mrb[0].mxu0
        %v797 = vpop.f32.mrb[0].mxu0
        %v798 = vadd.f32 0.0, %v797
        %v799 = vpop.f32.mrb[0].mxu0
        %800 = vmatprep.mubr.bf16.mxu0 %v409
        %801 = vmatmul.mubr.bf16.gmra.mrb[0].mxu0 %v408
        %v802 = vpop.f32.mrb[0].mxu0
        %v803 = vadd.f32 0.0, %v802
        %v804 = vpop.f32.mrb[0].mxu0
        %v805 = vpop.f32.mrb[0].mxu0
        %v806 = vadd.f32 0.0, %v805
        %v807 = vpop.f32.mrb[0].mxu0
        %808 = vmatprep.mubr.bf16.mxu0 %v413
        %809 = vmatmul.mubr.bf16.gmra.mrb[0].mxu0 %v412
        %v810 = vpop.f32.mrb[0].mxu0
        %v811 = vadd.f32 0.0, %v810
        %v812 = vpop.f32.mrb[0].mxu0
        %v813 = vpop.f32.mrb[0].mxu0
        %v814 = vadd.f32 0.0, %v813
        %v815 = vpop.f32.mrb[0].mxu0
        %816 = vmatprep.mubr.bf16.mxu0 %v417
        %817 = vmatmul.mubr.bf16.gmra.mrb[0].mxu0 %v416
        %v818 = vpop.f32.mrb[0].mxu0
        %v819 = vadd.f32 0.0, %v818
        %v820 = vpop.f32.mrb[0].mxu0
        %v821 = vpop.f32.mrb[0].mxu0
        %v822 = vadd.f32 0.0, %v821
        %v823 = vpop.f32.mrb[0].mxu0
        %824 = vmatprep.mubr.bf16.mxu0 %v421
        %825 = vmatmul.mubr.bf16.gmra.mrb[0].mxu0 %v420
        %v826 = vpop.f32.mrb[0].mxu0
        %v827 = vadd.f32 0.0, %v826
        %v828 = vpop.f32.mrb[0].mxu0
        %v829 = vpop.f32.mrb[0].mxu0
        %v830 = vadd.f32 0.0, %v829
        %v831 = vpop.f32.mrb[0].mxu0
        %832 = vmatprep.mubr.bf16.mxu0 %v425
        %833 = vmatmul.mubr.bf16.gmra.mrb[0].mxu0 %v424
        %v834 = vpop.f32.mrb[0].mxu0
        %v835 = vadd.f32 0.0, %v834
        %v836 = vpop.f32.mrb[0].mxu0
        %v837 = vpop.f32.mrb[0].mxu0
        %v838 = vadd.f32 0.0, %v837
        %v839 = vpop.f32.mrb[0].mxu0
        %840 = vmatprep.mubr.bf16.mxu0 %v429
        %841 = vmatmul.mubr.bf16.gmra.mrb[0].mxu0 %v428
        %v842 = vpop.f32.mrb[0].mxu0
        %v843 = vadd.f32 0.0, %v842
        %v844 = vpop.f32.mrb[0].mxu0
        %v845 = vpop.f32.mrb[0].mxu0
        %v846 = vadd.f32 0.0, %v845
        %v847 = vpop.f32.mrb[0].mxu0
        %848 = vdwg.mxu0
        %849 = vmatprep.subr.bf16.mxu0 0
        %850 = vmatpush1.bf16.msra.mxu0 %v640
        %851 = vmatprep.subr.bf16.mxu0 0
        %852 = vmatpush1.bf16.msra.mxu0 %v641
        %853 = vmatprep.subr.bf16.mxu0 0
        %854 = vmatpush1.bf16.msra.mxu0 %v642
        %855 = vmatprep.subr.bf16.mxu0 0
        %856 = vmatpush1.bf16.msra.mxu0 %v643
        %857 = vmatprep.subr.bf16.mxu0 0
        %858 = vmatpush1.bf16.msra.mxu0 %v644
        %859 = vmatprep.subr.bf16.mxu0 0
        %860 = vmatpush1.bf16.msra.mxu0 %v645
        %861 = vmatprep.subr.bf16.mxu0 0
        %862 = vmatpush1.bf16.msra.mxu0 %v646
        %863 = vmatprep.subr.bf16.mxu0 0
        %864 = vmatpush1.bf16.msra.mxu0 %v647
        %865 = vmatprep.subr.bf16.mxu0 0
        %866 = vmatpush1.bf16.msra.mxu0 %v648
        %867 = vmatprep.subr.bf16.mxu0 0
        %868 = vmatpush1.bf16.msra.mxu0 %v649
        %869 = vmatprep.subr.bf16.mxu0 0
        %870 = vmatpush1.bf16.msra.mxu0 %v650
        %871 = vmatprep.subr.bf16.mxu0 0
        %872 = vmatpush1.bf16.msra.mxu0 %v651
        %873 = vmatprep.subr.bf16.mxu0 0
        %874 = vmatpush1.bf16.msra.mxu0 %v652
        %875 = vmatprep.subr.bf16.mxu0 0
        %876 = vmatpush1.bf16.msra.mxu0 %v653
        %877 = vmatprep.subr.bf16.mxu0 0
        %878 = vmatpush1.bf16.msra.mxu0 %v654
        %879 = vmatprep.subr.bf16.mxu0 0
        %880 = vmatpush1.bf16.msra.mxu0 %v655
        %881 = vmatprep.mubr.bf16.mxu0 %v371
        %882 = vmatmul.mubr.bf16.gmra.mrb[0].mxu0 %v370
        %v883 = vpop.f32.mrb[0].mxu0
        %v884 = vadd.f32 %v723, %v883
        %v885 = vpop.f32.mrb[0].mxu0
        %v886 = vpop.f32.mrb[0].mxu0
        %v887 = vadd.f32 %v726, %v886
        %v888 = vpop.f32.mrb[0].mxu0
        %889 = vmatprep.mubr.bf16.mxu0 %v375
        %890 = vmatmul.mubr.bf16.gmra.mrb[0].mxu0 %v374
        %v891 = vpop.f32.mrb[0].mxu0
        %v892 = vadd.f32 %v731, %v891
        %v893 = vpop.f32.mrb[0].mxu0
        %v894 = vpop.f32.mrb[0].mxu0
        %v895 = vadd.f32 %v734, %v894
        %v896 = vpop.f32.mrb[0].mxu0
        %897 = vmatprep.mubr.bf16.mxu0 %v379
        %898 = vmatmul.mubr.bf16.gmra.mrb[0].mxu0 %v378
        %v899 = vpop.f32.mrb[0].mxu0
        %v900 = vadd.f32 %v739, %v899
        %v901 = vpop.f32.mrb[0].mxu0
        %v902 = vpop.f32.mrb[0].mxu0
        %v903 = vadd.f32 %v742, %v902
        %v904 = vpop.f32.mrb[0].mxu0
        %905 = vmatprep.mubr.bf16.mxu0 %v383
        %906 = vmatmul.mubr.bf16.gmra.mrb[0].mxu0 %v382
        %v907 = vpop.f32.mrb[0].mxu0
        %v908 = vadd.f32 %v747, %v907
        %v909 = vpop.f32.mrb[0].mxu0
        %v910 = vpop.f32.mrb[0].mxu0
        %v911 = vadd.f32 %v750, %v910
        %v912 = vpop.f32.mrb[0].mxu0
        %913 = vmatprep.mubr.bf16.mxu0 %v387
        %914 = vmatmul.mubr.bf16.gmra.mrb[0].mxu0 %v386
        %v915 = vpop.f32.mrb[0].mxu0
        %v916 = vadd.f32 %v755, %v915
        %v917 = vpop.f32.mrb[0].mxu0
        %v918 = vpop.f32.mrb[0].mxu0
        %v919 = vadd.f32 %v758, %v918
        %v920 = vpop.f32.mrb[0].mxu0
        %921 = vmatprep.mubr.bf16.mxu0 %v391
        %922 = vmatmul.mubr.bf16.gmra.mrb[0].mxu0 %v390
        %v923 = vpop.f32.mrb[0].mxu0
        %v924 = vadd.f32 %v763, %v923
        %v925 = vpop.f32.mrb[0].mxu0
        %v926 = vpop.f32.mrb[0].mxu0
        %v927 = vadd.f32 %v766, %v926
        %v928 = vpop.f32.mrb[0].mxu0
        %929 = vmatprep.mubr.bf16.mxu0 %v395
        %930 = vmatmul.mubr.bf16.gmra.mrb[0].mxu0 %v394
        %v931 = vpop.f32.mrb[0].mxu0
        %v932 = vadd.f32 %v771, %v931
        %v933 = vpop.f32.mrb[0].mxu0
        %v934 = vpop.f32.mrb[0].mxu0
        %v935 = vadd.f32 %v774, %v934
        %v936 = vpop.f32.mrb[0].mxu0
        %937 = vmatprep.mubr.bf16.mxu0 %v399
        %938 = vmatmul.mubr.bf16.gmra.mrb[0].mxu0 %v398
        %v939 = vpop.f32.mrb[0].mxu0
        %v940 = vadd.f32 %v779, %v939
        %v941 = vpop.f32.mrb[0].mxu0
        %v942 = vpop.f32.mrb[0].mxu0
        %v943 = vadd.f32 %v782, %v942
        %v944 = vpop.f32.mrb[0].mxu0
        %945 = vmatprep.mubr.bf16.mxu0 %v403
        %946 = vmatmul.mubr.bf16.gmra.mrb[0].mxu0 %v402
        %v947 = vpop.f32.mrb[0].mxu0
        %v948 = vadd.f32 %v787, %v947
        %v949 = vpop.f32.mrb[0].mxu0
        %v950 = vpop.f32.mrb[0].mxu0
        %v951 = vadd.f32 %v790, %v950
        %v952 = vpop.f32.mrb[0].mxu0
        %953 = vmatprep.mubr.bf16.mxu0 %v407
        %954 = vmatmul.mubr.bf16.gmra.mrb[0].mxu0 %v406
        %v955 = vpop.f32.mrb[0].mxu0
        %v956 = vadd.f32 %v795, %v955
        %v957 = vpop.f32.mrb[0].mxu0
        %v958 = vpop.f32.mrb[0].mxu0
        %v959 = vadd.f32 %v798, %v958
        %v960 = vpop.f32.mrb[0].mxu0
        %961 = vmatprep.mubr.bf16.mxu0 %v411
        %962 = vmatmul.mubr.bf16.gmra.mrb[0].mxu0 %v410
        %v963 = vpop.f32.mrb[0].mxu0
        %v964 = vadd.f32 %v803, %v963
        %v965 = vpop.f32.mrb[0].mxu0
        %v966 = vpop.f32.mrb[0].mxu0
        %v967 = vadd.f32 %v806, %v966
        %v968 = vpop.f32.mrb[0].mxu0
        %969 = vmatprep.mubr.bf16.mxu0 %v415
        %970 = vmatmul.mubr.bf16.gmra.mrb[0].mxu0 %v414
        %v971 = vpop.f32.mrb[0].mxu0
        %v972 = vadd.f32 %v811, %v971
        %v973 = vpop.f32.mrb[0].mxu0
        %v974 = vpop.f32.mrb[0].mxu0
        %v975 = vadd.f32 %v814, %v974
        %v976 = vpop.f32.mrb[0].mxu0
        %977 = vmatprep.mubr.bf16.mxu0 %v419
        %978 = vmatmul.mubr.bf16.gmra.mrb[0].mxu0 %v418
        %v979 = vpop.f32.mrb[0].mxu0
        %v980 = vadd.f32 %v819, %v979
        %v981 = vpop.f32.mrb[0].mxu0
        %v982 = vpop.f32.mrb[0].mxu0
        %v983 = vadd.f32 %v822, %v982
        %v984 = vpop.f32.mrb[0].mxu0
        %985 = vmatprep.mubr.bf16.mxu0 %v423
        %986 = vmatmul.mubr.bf16.gmra.mrb[0].mxu0 %v422
        %v987 = vpop.f32.mrb[0].mxu0
        %v988 = vadd.f32 %v827, %v987
        %v989 = vpop.f32.mrb[0].mxu0
        %v990 = vpop.f32.mrb[0].mxu0
        %v991 = vadd.f32 %v830, %v990
        %v992 = vpop.f32.mrb[0].mxu0
        %993 = vmatprep.mubr.bf16.mxu0 %v427
        %994 = vmatmul.mubr.bf16.gmra.mrb[0].mxu0 %v426
        %v995 = vpop.f32.mrb[0].mxu0
        %v996 = vadd.f32 %v835, %v995
        %v997 = vpop.f32.mrb[0].mxu0
        %v998 = vpop.f32.mrb[0].mxu0
        %v999 = vadd.f32 %v838, %v998
        %v1000 = vpop.f32.mrb[0].mxu0
        %1001 = vmatprep.mubr.bf16.mxu0 %v431
        %1002 = vmatmul.mubr.bf16.gmra.mrb[0].mxu0 %v430
        %v1003 = vpop.f32.mrb[0].mxu0
        %v1004 = vadd.f32 %v843, %v1003
        %v1005 = vpop.f32.mrb[0].mxu0
        %v1006 = vpop.f32.mrb[0].mxu0
        %v1007 = vadd.f32 %v846, %v1006
        %v1008 = vpop.f32.mrb[0].mxu0
        %1009 = vdwg.mxu0
        %v1010 = vpack.c.bf16 %v887, %v884
        %v1011 = vpack.c.bf16 %v895, %v892
        %v1012 = vpack.c.bf16 %v903, %v900
        %v1013 = vpack.c.bf16 %v911, %v908
        %v1014 = vpack.c.bf16 %v919, %v916
        %v1015 = vpack.c.bf16 %v927, %v924
        %v1016 = vpack.c.bf16 %v935, %v932
        %v1017 = vpack.c.bf16 %v943, %v940
        %v1018 = vpack.c.bf16 %v951, %v948
        %v1019 = vpack.c.bf16 %v959, %v956
        %v1020 = vpack.c.bf16 %v967, %v964
        %v1021 = vpack.c.bf16 %v975, %v972
        %v1022 = vpack.c.bf16 %v983, %v980
        %v1023 = vpack.c.bf16 %v991, %v988
        %v1024 = vpack.c.bf16 %v999, %v996
        %v1025 = vpack.c.bf16 %v1007, %v1004
        %v1026 = vld [vmem:[%s1] sm:$0xf]
        %v1027 = vld [vmem:[%s1 + $0x4] sm:$0xf]
        %v1028 = vld [vmem:[%s1 + $0x8] sm:$0xf]
        %v1029 = vld [vmem:[%s1 + $0xc] sm:$0xf]
        %v1030 = vld [vmem:[%s1 + $0x10] sm:$0xf]
        %v1031 = vld [vmem:[%s1 + $0x14] sm:$0xf]
        %v1032 = vld [vmem:[%s1 + $0x18] sm:$0xf]
        %v1033 = vld [vmem:[%s1 + $0x1c] sm:$0xf]
        %v1042 = vunpack.c.l.b16 %v1026
        %v1043 = vunpack.c.l.b16 %v1027
        %v1044 = vunpack.c.l.b16 %v1028
        %v1045 = vunpack.c.l.b16 %v1029
        %v1046 = vunpack.c.l.b16 %v1030
        %v1047 = vunpack.c.l.b16 %v1031
        %v1048 = vunpack.c.l.b16 %v1032
        %v1049 = vunpack.c.l.b16 %v1033
        %v1050 = vpack.c.b16 %v1043, %v1042
        %v1051 = vpack.c.b16 %v1045, %v1044
        %v1052 = vpack.c.b16 %v1047, %v1046
        %v1053 = vpack.c.b16 %v1049, %v1048
        %vm1058 = vcmask 523264
        %v1060 = vsel %vm1058, %v1010, 0
        %v1063 = vsel %vm1058, %v1011, 0
        %v1066 = vsel %vm1058, %v1012, 0
        %v1069 = vsel %vm1058, %v1013, 0
        %v1072 = vsel %vm1058, %v1014, 0
        %v1075 = vsel %vm1058, %v1015, 0
        %v1078 = vsel %vm1058, %v1016, 0
        %v1081 = vsel %vm1058, %v1017, 0
        %v1084 = vsel %vm1058, %v1018, 0
        %v1087 = vsel %vm1058, %v1019, 0
        %v1090 = vsel %vm1058, %v1020, 0
        %v1093 = vsel %vm1058, %v1021, 0
        %v1096 = vsel %vm1058, %v1022, 0
        %v1099 = vsel %vm1058, %v1023, 0
        %v1102 = vsel %vm1058, %v1024, 0
        %v1105 = vsel %vm1058, %v1025, 0
        %1107 = vmatprep.subr.bf16.mxu0 0
        %1108 = vmatpush1.bf16.msra.mxu0 %v1050
        %1109 = vmatprep.subr.bf16.mxu0 0
        %1110 = vmatpush1.bf16.msra.mxu0 %v1051
        %1111 = vmatprep.subr.bf16.mxu0 0
        %1112 = vmatpush1.bf16.msra.mxu0 %v1052
        %1113 = vmatprep.subr.bf16.mxu0 0
        %1114 = vmatpush1.bf16.msra.mxu0 %v1053
        %1115 = vmatprep.subr.bf16.mxu0 0
        %1116 = vmatpush1.bf16.msra.mxu0 0
        %1117 = vmatprep.subr.bf16.mxu0 0
        %1118 = vmatpush1.bf16.msra.mxu0 0
        %1119 = vmatprep.subr.bf16.mxu0 0
        %1120 = vmatpush1.bf16.msra.mxu0 0
        %1121 = vmatprep.subr.bf16.mxu0 0
        %1122 = vmatpush1.bf16.msra.mxu0 0
        %1123 = vmatprep.subr.bf16.mxu0 0
        %1124 = vmatpush1.bf16.msra.mxu0 0
        %1125 = vmatprep.subr.bf16.mxu0 0
        %1126 = vmatpush1.bf16.msra.mxu0 0
        %1127 = vmatprep.subr.bf16.mxu0 0
        %1128 = vmatpush1.bf16.msra.mxu0 0
        %1129 = vmatprep.subr.bf16.mxu0 0
        %1130 = vmatpush1.bf16.msra.mxu0 0
        %1131 = vmatprep.subr.bf16.mxu0 0
        %1132 = vmatpush1.bf16.msra.mxu0 0
        %1133 = vmatprep.subr.bf16.mxu0 0
        %1134 = vmatpush1.bf16.msra.mxu0 0
        %1135 = vmatprep.subr.bf16.mxu0 0
        %1136 = vmatpush1.bf16.msra.mxu0 0
        %1137 = vmatprep.subr.bf16.mxu0 0
        %1138 = vmatpush1.bf16.msra.mxu0 0
        %1139 = vmatprep.mubr.bf16.mxu0 0
        %1140 = vmatmul.mubr.bf16.gmra.mrb[0].mxu0 %v1060
        %v1141 = vpop.f32.mrb[0].mxu0
        %v1142 = vadd.f32 0.0, %v1141
        %v1143 = vpop.f32.mrb[0].mxu0
        %v1144 = vpop.f32.mrb[0].mxu0
        %v1145 = vadd.f32 0.0, %v1144
        %v1146 = vpop.f32.mrb[0].mxu0
        %1147 = vmatprep.mubr.bf16.mxu0 0
        %1148 = vmatmul.mubr.bf16.gmra.mrb[0].mxu0 %v1063
        %v1149 = vpop.f32.mrb[0].mxu0
        %v1150 = vadd.f32 0.0, %v1149
        %v1151 = vpop.f32.mrb[0].mxu0
        %v1152 = vpop.f32.mrb[0].mxu0
        %v1153 = vadd.f32 0.0, %v1152
        %v1154 = vpop.f32.mrb[0].mxu0
        %1155 = vmatprep.mubr.bf16.mxu0 0
        %1156 = vmatmul.mubr.bf16.gmra.mrb[0].mxu0 %v1066
        %v1157 = vpop.f32.mrb[0].mxu0
        %v1158 = vadd.f32 0.0, %v1157
        %v1159 = vpop.f32.mrb[0].mxu0
        %v1160 = vpop.f32.mrb[0].mxu0
        %v1161 = vadd.f32 0.0, %v1160
        %v1162 = vpop.f32.mrb[0].mxu0
        %1163 = vmatprep.mubr.bf16.mxu0 0
        %1164 = vmatmul.mubr.bf16.gmra.mrb[0].mxu0 %v1069
        %v1165 = vpop.f32.mrb[0].mxu0
        %v1166 = vadd.f32 0.0, %v1165
        %v1167 = vpop.f32.mrb[0].mxu0
        %v1168 = vpop.f32.mrb[0].mxu0
        %v1169 = vadd.f32 0.0, %v1168
        %v1170 = vpop.f32.mrb[0].mxu0
        %1171 = vmatprep.mubr.bf16.mxu0 0
        %1172 = vmatmul.mubr.bf16.gmra.mrb[0].mxu0 %v1072
        %v1173 = vpop.f32.mrb[0].mxu0
        %v1174 = vadd.f32 0.0, %v1173
        %v1175 = vpop.f32.mrb[0].mxu0
        %v1176 = vpop.f32.mrb[0].mxu0
        %v1177 = vadd.f32 0.0, %v1176
        %v1178 = vpop.f32.mrb[0].mxu0
        %1179 = vmatprep.mubr.bf16.mxu0 0
        %1180 = vmatmul.mubr.bf16.gmra.mrb[0].mxu0 %v1075
        %v1181 = vpop.f32.mrb[0].mxu0
        %v1182 = vadd.f32 0.0, %v1181
        %v1183 = vpop.f32.mrb[0].mxu0
        %v1184 = vpop.f32.mrb[0].mxu0
        %v1185 = vadd.f32 0.0, %v1184
        %v1186 = vpop.f32.mrb[0].mxu0
        %1187 = vmatprep.mubr.bf16.mxu0 0
        %1188 = vmatmul.mubr.bf16.gmra.mrb[0].mxu0 %v1078
        %v1189 = vpop.f32.mrb[0].mxu0
        %v1190 = vadd.f32 0.0, %v1189
        %v1191 = vpop.f32.mrb[0].mxu0
        %v1192 = vpop.f32.mrb[0].mxu0
        %v1193 = vadd.f32 0.0, %v1192
        %v1194 = vpop.f32.mrb[0].mxu0
        %1195 = vmatprep.mubr.bf16.mxu0 0
        %1196 = vmatmul.mubr.bf16.gmra.mrb[0].mxu0 %v1081
        %v1197 = vpop.f32.mrb[0].mxu0
        %v1198 = vadd.f32 0.0, %v1197
        %v1199 = vpop.f32.mrb[0].mxu0
        %v1200 = vpop.f32.mrb[0].mxu0
        %v1201 = vadd.f32 0.0, %v1200
        %v1202 = vpop.f32.mrb[0].mxu0
        %1203 = vmatprep.mubr.bf16.mxu0 0
        %1204 = vmatmul.mubr.bf16.gmra.mrb[0].mxu0 %v1084
        %v1205 = vpop.f32.mrb[0].mxu0
        %v1206 = vadd.f32 0.0, %v1205
        %v1207 = vpop.f32.mrb[0].mxu0
        %v1208 = vpop.f32.mrb[0].mxu0
        %v1209 = vadd.f32 0.0, %v1208
        %v1210 = vpop.f32.mrb[0].mxu0
        %1211 = vmatprep.mubr.bf16.mxu0 0
        %1212 = vmatmul.mubr.bf16.gmra.mrb[0].mxu0 %v1087
        %v1213 = vpop.f32.mrb[0].mxu0
        %v1214 = vadd.f32 0.0, %v1213
        %v1215 = vpop.f32.mrb[0].mxu0
        %v1216 = vpop.f32.mrb[0].mxu0
        %v1217 = vadd.f32 0.0, %v1216
        %v1218 = vpop.f32.mrb[0].mxu0
        %1219 = vmatprep.mubr.bf16.mxu0 0
        %1220 = vmatmul.mubr.bf16.gmra.mrb[0].mxu0 %v1090
        %v1221 = vpop.f32.mrb[0].mxu0
        %v1222 = vadd.f32 0.0, %v1221
        %v1223 = vpop.f32.mrb[0].mxu0
        %v1224 = vpop.f32.mrb[0].mxu0
        %v1225 = vadd.f32 0.0, %v1224
        %v1226 = vpop.f32.mrb[0].mxu0
        %1227 = vmatprep.mubr.bf16.mxu0 0
        %1228 = vmatmul.mubr.bf16.gmra.mrb[0].mxu0 %v1093
        %v1229 = vpop.f32.mrb[0].mxu0
        %v1230 = vadd.f32 0.0, %v1229
        %v1231 = vpop.f32.mrb[0].mxu0
        %v1232 = vpop.f32.mrb[0].mxu0
        %v1233 = vadd.f32 0.0, %v1232
        %v1234 = vpop.f32.mrb[0].mxu0
        %1235 = vmatprep.mubr.bf16.mxu0 0
        %1236 = vmatmul.mubr.bf16.gmra.mrb[0].mxu0 %v1096
        %v1237 = vpop.f32.mrb[0].mxu0
        %v1238 = vadd.f32 0.0, %v1237
        %v1239 = vpop.f32.mrb[0].mxu0
        %v1240 = vpop.f32.mrb[0].mxu0
        %v1241 = vadd.f32 0.0, %v1240
        %v1242 = vpop.f32.mrb[0].mxu0
        %1243 = vmatprep.mubr.bf16.mxu0 0
        %1244 = vmatmul.mubr.bf16.gmra.mrb[0].mxu0 %v1099
        %v1245 = vpop.f32.mrb[0].mxu0
        %v1246 = vadd.f32 0.0, %v1245
        %v1247 = vpop.f32.mrb[0].mxu0
        %v1248 = vpop.f32.mrb[0].mxu0
        %v1249 = vadd.f32 0.0, %v1248
        %v1250 = vpop.f32.mrb[0].mxu0
        %1251 = vmatprep.mubr.bf16.mxu0 0
        %1252 = vmatmul.mubr.bf16.gmra.mrb[0].mxu0 %v1102
        %v1253 = vpop.f32.mrb[0].mxu0
        %v1254 = vadd.f32 0.0, %v1253
        %v1255 = vpop.f32.mrb[0].mxu0
        %v1256 = vpop.f32.mrb[0].mxu0
        %v1257 = vadd.f32 0.0, %v1256
        %v1258 = vpop.f32.mrb[0].mxu0
        %1259 = vmatprep.mubr.bf16.mxu0 0
        %1260 = vmatmul.mubr.bf16.gmra.mrb[0].mxu0 %v1105
        %v1261 = vpop.f32.mrb[0].mxu0
        %v1262 = vadd.f32 0.0, %v1261
        %v1263 = vpop.f32.mrb[0].mxu0
        %v1264 = vpop.f32.mrb[0].mxu0
        %v1265 = vadd.f32 0.0, %v1264
        %v1266 = vpop.f32.mrb[0].mxu0
        %1267 = vdwg.mxu0
        %s1268 = smul.u32 %s20, 256
        %s1269 = scalar_lea.vmem [#allocation7], %s1268
        %1270 = vst [vmem:[%s1269] sm:$0xff] %v1142
        %1271 = vst [vmem:[%s1269 + $0x8] sm:$0xff] %v1145
        %1272 = vst [vmem:[%s1269 + $0x10] sm:$0xff] %v1150
        %1273 = vst [vmem:[%s1269 + $0x18] sm:$0xff] %v1153
        %1274 = vst [vmem:[%s1269 + $0x20] sm:$0xff] %v1158
        %1275 = vst [vmem:[%s1269 + $0x28] sm:$0xff] %v1161
        %1276 = vst [vmem:[%s1269 + $0x30] sm:$0xff] %v1166
        %1277 = vst [vmem:[%s1269 + $0x38] sm:$0xff] %v1169
        %1278 = vst [vmem:[%s1269 + $0x40] sm:$0xff] %v1174
        %1279 = vst [vmem:[%s1269 + $0x48] sm:$0xff] %v1177
        %1280 = vst [vmem:[%s1269 + $0x50] sm:$0xff] %v1182
        %1281 = vst [vmem:[%s1269 + $0x58] sm:$0xff] %v1185
        %1282 = vst [vmem:[%s1269 + $0x60] sm:$0xff] %v1190
        %1283 = vst [vmem:[%s1269 + $0x68] sm:$0xff] %v1193
        %1284 = vst [vmem:[%s1269 + $0x70] sm:$0xff] %v1198
        %1285 = vst [vmem:[%s1269 + $0x78] sm:$0xff] %v1201
        %1286 = vst [vmem:[%s1269 + $0x80] sm:$0xff] %v1206
        %1287 = vst [vmem:[%s1269 + $0x88] sm:$0xff] %v1209
        %1288 = vst [vmem:[%s1269 + $0x90] sm:$0xff] %v1214
        %1289 = vst [vmem:[%s1269 + $0x98] sm:$0xff] %v1217
        %1290 = vst [vmem:[%s1269 + $0xa0] sm:$0xff] %v1222
        %1291 = vst [vmem:[%s1269 + $0xa8] sm:$0xff] %v1225
        %1292 = vst [vmem:[%s1269 + $0xb0] sm:$0xff] %v1230
        %1293 = vst [vmem:[%s1269 + $0xb8] sm:$0xff] %v1233
        %1294 = vst [vmem:[%s1269 + $0xc0] sm:$0xff] %v1238
        %1295 = vst [vmem:[%s1269 + $0xc8] sm:$0xff] %v1241
        %1296 = vst [vmem:[%s1269 + $0xd0] sm:$0xff] %v1246
        %1297 = vst [vmem:[%s1269 + $0xd8] sm:$0xff] %v1249
        %1298 = vst [vmem:[%s1269 + $0xe0] sm:$0xff] %v1254
        %1299 = vst [vmem:[%s1269 + $0xe8] sm:$0xff] %v1257
        %1300 = vst [vmem:[%s1269 + $0xf0] sm:$0xff] %v1262
        %1301 = vst [vmem:[%s1269 + $0xf8] sm:$0xff] %v1265
        %v1302 = vld [vmem:[#allocation2] sm:$0x1]
        %v1303 = vadd.f32 %v1142, %v1145
        %v1304 = vadd.f32 %v1303, %v1150
        %v1305 = vadd.f32 %v1304, %v1153
        %v1306 = vadd.f32 %v1305, %v1158
        %v1307 = vadd.f32 %v1306, %v1161
        %v1308 = vadd.f32 %v1307, %v1166
        %v1309 = vadd.f32 %v1308, %v1169
        %v1310 = vadd.f32 %v1309, %v1174
        %v1311 = vadd.f32 %v1310, %v1177
        %v1312 = vadd.f32 %v1311, %v1182
        %v1313 = vadd.f32 %v1312, %v1185
        %v1314 = vadd.f32 %v1313, %v1190
        %v1315 = vadd.f32 %v1314, %v1193
        %v1316 = vadd.f32 %v1315, %v1198
        %v1317 = vadd.f32 %v1316, %v1201
        %v1318 = vadd.f32 %v1317, %v1206
        %v1319 = vadd.f32 %v1318, %v1209
        %v1320 = vadd.f32 %v1319, %v1214
        %v1321 = vadd.f32 %v1320, %v1217
        %v1322 = vadd.f32 %v1321, %v1222
        %v1323 = vadd.f32 %v1322, %v1225
        %v1324 = vadd.f32 %v1323, %v1230
        %v1325 = vadd.f32 %v1324, %v1233
        %v1326 = vadd.f32 %v1325, %v1238
        %v1327 = vadd.f32 %v1326, %v1241
        %v1328 = vadd.f32 %v1327, %v1246
        %v1329 = vadd.f32 %v1328, %v1249
        %v1330 = vadd.f32 %v1329, %v1254
        %v1331 = vadd.f32 %v1330, %v1257
        %v1332 = vadd.f32 %v1331, %v1262
        %v1333 = vadd.f32 %v1332, %v1265
        %v1334 = vrot.slane %v1333, 4
        %v1335 = vadd.f32 %v1333, %v1334
        %v1336 = vrot.slane %v1335, 2
        %v1337 = vadd.f32 %v1335, %v1336
        %v1338 = vrot.slane %v1337, 1
        %v1339 = vadd.f32 %v1337, %v1338
        %v1340 = vadd.f32 %v1302, %v1339
        %1341 = vst [vmem:[#allocation2] sm:$0x1] %v1340
        %v1342 = vld [vmem:[#allocation3] sm:$0x1]
        %v1343 = vmul.f32 %v1142, %v1142
        %v1344 = vmul.f32 %v1145, %v1145
        %v1345 = vmul.f32 %v1150, %v1150
        %v1346 = vmul.f32 %v1153, %v1153
        %v1347 = vmul.f32 %v1158, %v1158
        %v1348 = vmul.f32 %v1161, %v1161
        %v1349 = vmul.f32 %v1166, %v1166
        %v1350 = vmul.f32 %v1169, %v1169
        %v1351 = vmul.f32 %v1174, %v1174
        %v1352 = vmul.f32 %v1177, %v1177
        %v1353 = vmul.f32 %v1182, %v1182
        %v1354 = vmul.f32 %v1185, %v1185
        %v1355 = vmul.f32 %v1190, %v1190
        %v1356 = vmul.f32 %v1193, %v1193
        %v1357 = vmul.f32 %v1198, %v1198
        %v1358 = vmul.f32 %v1201, %v1201
        %v1359 = vmul.f32 %v1206, %v1206
        %v1360 = vmul.f32 %v1209, %v1209
        %v1361 = vmul.f32 %v1214, %v1214
        %v1362 = vmul.f32 %v1217, %v1217
        %v1363 = vmul.f32 %v1222, %v1222
        %v1364 = vmul.f32 %v1225, %v1225
        %v1365 = vmul.f32 %v1230, %v1230
        %v1366 = vmul.f32 %v1233, %v1233
        %v1367 = vmul.f32 %v1238, %v1238
        %v1368 = vmul.f32 %v1241, %v1241
        %v1369 = vmul.f32 %v1246, %v1246
        %v1370 = vmul.f32 %v1249, %v1249
        %v1371 = vmul.f32 %v1254, %v1254
        %v1372 = vmul.f32 %v1257, %v1257
        %v1373 = vmul.f32 %v1262, %v1262
        %v1374 = vmul.f32 %v1265, %v1265
        %v1375 = vadd.f32 %v1343, %v1344
        %v1376 = vadd.f32 %v1375, %v1345
        %v1377 = vadd.f32 %v1376, %v1346
        %v1378 = vadd.f32 %v1377, %v1347
        %v1379 = vadd.f32 %v1378, %v1348
        %v1380 = vadd.f32 %v1379, %v1349
        %v1381 = vadd.f32 %v1380, %v1350
        %v1382 = vadd.f32 %v1381, %v1351
        %v1383 = vadd.f32 %v1382, %v1352
        %v1384 = vadd.f32 %v1383, %v1353
        %v1385 = vadd.f32 %v1384, %v1354
        %v1386 = vadd.f32 %v1385, %v1355
        %v1387 = vadd.f32 %v1386, %v1356
        %v1388 = vadd.f32 %v1387, %v1357
        %v1389 = vadd.f32 %v1388, %v1358
        %v1390 = vadd.f32 %v1389, %v1359
        %v1391 = vadd.f32 %v1390, %v1360
        %v1392 = vadd.f32 %v1391, %v1361
        %v1393 = vadd.f32 %v1392, %v1362
        %v1394 = vadd.f32 %v1393, %v1363
        %v1395 = vadd.f32 %v1394, %v1364
        %v1396 = vadd.f32 %v1395, %v1365
        %v1397 = vadd.f32 %v1396, %v1366
        %v1398 = vadd.f32 %v1397, %v1367
        %v1399 = vadd.f32 %v1398, %v1368
        %v1400 = vadd.f32 %v1399, %v1369
        %v1401 = vadd.f32 %v1400, %v1370
        %v1402 = vadd.f32 %v1401, %v1371
        %v1403 = vadd.f32 %v1402, %v1372
        %v1404 = vadd.f32 %v1403, %v1373
        %v1405 = vadd.f32 %v1404, %v1374
        %v1406 = vrot.slane %v1405, 4
        %v1407 = vadd.f32 %v1405, %v1406
        %v1408 = vrot.slane %v1407, 2
        %v1409 = vadd.f32 %v1407, %v1408
        %v1410 = vrot.slane %v1409, 1
        %v1411 = vadd.f32 %v1409, %v1410
        %v1412 = vadd.f32 %v1342, %v1411
        %1413 = vst [vmem:[#allocation3] sm:$0x1] %v1412
        %p1414 = scmp.eq.s32.totalorder %s20, 1
        // Predicated region
        $region49: #{graph_convolution.1} parent=39 // pred_check
          %p1415 = pneg %p1414
        $region50: #{graph_convolution.1} parent=39 // pred_check_branch
          %1417 = sbr.rel (%p1415) target = $region52
        $region51: #{graph_convolution.1} parent=39 // pred_region
          %v1418 = vld [vmem:[#allocation2] sm:$0x1]
          %v1419 = vmul.f32 %v1418, 0.001953125
          %v1420 = vld [vmem:[#allocation3] sm:$0x1]
          %v1421 = vmul.f32 %v1420, 0.001953125
          %v1422 = vmul.f32 %v1419, %v1419
          %v1423 = vsub.f32 %v1421, %v1422
          %v1424 = vmax.f32 %v1423, 0.0
          %v1425 = vadd.f32 %v1424, 1e-05
          %v1426 = vrsqrt.pop %v1425
          %v1427 = vld [vmem:[%s2] sm:$0x1]
          %v1428 = vmul.f32 %v1427, %v1426
          %v1429 = vld [vmem:[%s3] sm:$0x1]
          %v1430 = vmul.f32 %v1419, %v1428
          %v1431 = vsub.f32 %v1429, %v1430
          %v1432 = vld [vmem:[#allocation7] sm:$0xff]
          %v1433 = vld [vmem:[#allocation7 + $0x8] sm:$0xff]
          %v1434 = vld [vmem:[#allocation7 + $0x10] sm:$0xff]
          %v1435 = vld [vmem:[#allocation7 + $0x18] sm:$0xff]
          %v1436 = vld [vmem:[#allocation7 + $0x20] sm:$0xff]
          %v1437 = vld [vmem:[#allocation7 + $0x28] sm:$0xff]
          %v1438 = vld [vmem:[#allocation7 + $0x30] sm:$0xff]
          %v1439 = vld [vmem:[#allocation7 + $0x38] sm:$0xff]
          %v1440 = vld [vmem:[#allocation7 + $0x40] sm:$0xff]
          %v1441 = vld [vmem:[#allocation7 + $0x48] sm:$0xff]
          %v1442 = vld [vmem:[#allocation7 + $0x50] sm:$0xff]
          %v1443 = vld [vmem:[#allocation7 + $0x58] sm:$0xff]
          %v1444 = vld [vmem:[#allocation7 + $0x60] sm:$0xff]
          %v1445 = vld [vmem:[#allocation7 + $0x68] sm:$0xff]
          %v1446 = vld [vmem:[#allocation7 + $0x70] sm:$0xff]
          %v1447 = vld [vmem:[#allocation7 + $0x78] sm:$0xff]
          %v1448 = vld [vmem:[#allocation7 + $0x80] sm:$0xff]
          %v1449 = vld [vmem:[#allocation7 + $0x88] sm:$0xff]
          %v1450 = vld [vmem:[#allocation7 + $0x90] sm:$0xff]
          %v1451 = vld [vmem:[#allocation7 + $0x98] sm:$0xff]
          %v1452 = vld [vmem:[#allocation7 + $0xa0] sm:$0xff]
          %v1453 = vld [vmem:[#allocation7 + $0xa8] sm:$0xff]
          %v1454 = vld [vmem:[#allocation7 + $0xb0] sm:$0xff]
          %v1455 = vld [vmem:[#allocation7 + $0xb8] sm:$0xff]
          %v1456 = vld [vmem:[#allocation7 + $0xc0] sm:$0xff]
          %v1457 = vld [vmem:[#allocation7 + $0xc8] sm:$0xff]
          %v1458 = vld [vmem:[#allocation7 + $0xd0] sm:$0xff]
          %v1459 = vld [vmem:[#allocation7 + $0xd8] sm:$0xff]
          %v1460 = vld [vmem:[#allocation7 + $0xe0] sm:$0xff]
          %v1461 = vld [vmem:[#allocation7 + $0xe8] sm:$0xff]
          %v1462 = vld [vmem:[#allocation7 + $0xf0] sm:$0xff]
          %v1463 = vld [vmem:[#allocation7 + $0xf8] sm:$0xff]
          %v1464 = vld [vmem:[#allocation7 + $0x100] sm:$0xff]
          %v1465 = vld [vmem:[#allocation7 + $0x108] sm:$0xff]
          %v1466 = vld [vmem:[#allocation7 + $0x110] sm:$0xff]
          %v1467 = vld [vmem:[#allocation7 + $0x118] sm:$0xff]
          %v1468 = vld [vmem:[#allocation7 + $0x120] sm:$0xff]
          %v1469 = vld [vmem:[#allocation7 + $0x128] sm:$0xff]
          %v1470 = vld [vmem:[#allocation7 + $0x130] sm:$0xff]
          %v1471 = vld [vmem:[#allocation7 + $0x138] sm:$0xff]
          %v1472 = vld [vmem:[#allocation7 + $0x140] sm:$0xff]
          %v1473 = vld [vmem:[#allocation7 + $0x148] sm:$0xff]
          %v1474 = vld [vmem:[#allocation7 + $0x150] sm:$0xff]
          %v1475 = vld [vmem:[#allocation7 + $0x158] sm:$0xff]
          %v1476 = vld [vmem:[#allocation7 + $0x160] sm:$0xff]
          %v1477 = vld [vmem:[#allocation7 + $0x168] sm:$0xff]
          %v1478 = vld [vmem:[#allocation7 + $0x170] sm:$0xff]
          %v1479 = vld [vmem:[#allocation7 + $0x178] sm:$0xff]
          %v1480 = vld [vmem:[#allocation7 + $0x180] sm:$0xff]
          %v1481 = vld [vmem:[#allocation7 + $0x188] sm:$0xff]
          %v1482 = vld [vmem:[#allocation7 + $0x190] sm:$0xff]
          %v1483 = vld [vmem:[#allocation7 + $0x198] sm:$0xff]
          %v1484 = vld [vmem:[#allocation7 + $0x1a0] sm:$0xff]
          %v1485 = vld [vmem:[#allocation7 + $0x1a8] sm:$0xff]
          %v1486 = vld [vmem:[#allocation7 + $0x1b0] sm:$0xff]
          %v1487 = vld [vmem:[#allocation7 + $0x1b8] sm:$0xff]
          %v1488 = vld [vmem:[#allocation7 + $0x1c0] sm:$0xff]
          %v1489 = vld [vmem:[#allocation7 + $0x1c8] sm:$0xff]
          %v1490 = vld [vmem:[#allocation7 + $0x1d0] sm:$0xff]
          %v1491 = vld [vmem:[#allocation7 + $0x1d8] sm:$0xff]
          %v1492 = vld [vmem:[#allocation7 + $0x1e0] sm:$0xff]
          %v1493 = vld [vmem:[#allocation7 + $0x1e8] sm:$0xff]
          %v1494 = vld [vmem:[#allocation7 + $0x1f0] sm:$0xff]
          %v1495 = vld [vmem:[#allocation7 + $0x1f8] sm:$0xff]
          %v1497 = vlaneseq
          %v1498 = vshrl.u32 %v1497, 7
          %v1499 = vsub.s32 0, %v1498
          %v1500 = vrot.slane %v1428, %v1499
          %v1502 = vmul.f32 %v1432, %v1500
          %v1503 = vmul.f32 %v1433, %v1500
          %v1504 = vmul.f32 %v1434, %v1500
          %v1505 = vmul.f32 %v1435, %v1500
          %v1506 = vmul.f32 %v1436, %v1500
          %v1507 = vmul.f32 %v1437, %v1500
          %v1508 = vmul.f32 %v1438, %v1500
          %v1509 = vmul.f32 %v1439, %v1500
          %v1510 = vmul.f32 %v1440, %v1500
          %v1511 = vmul.f32 %v1441, %v1500
          %v1512 = vmul.f32 %v1442, %v1500
          %v1513 = vmul.f32 %v1443, %v1500
          %v1514 = vmul.f32 %v1444, %v1500
          %v1515 = vmul.f32 %v1445, %v1500
          %v1516 = vmul.f32 %v1446, %v1500
          %v1517 = vmul.f32 %v1447, %v1500
          %v1518 = vmul.f32 %v1448, %v1500
          %v1519 = vmul.f32 %v1449, %v1500
          %v1520 = vmul.f32 %v1450, %v1500
          %v1521 = vmul.f32 %v1451, %v1500
          %v1522 = vmul.f32 %v1452, %v1500
          %v1523 = vmul.f32 %v1453, %v1500
          %v1524 = vmul.f32 %v1454, %v1500
          %v1525 = vmul.f32 %v1455, %v1500
          %v1526 = vmul.f32 %v1456, %v1500
          %v1527 = vmul.f32 %v1457, %v1500
          %v1528 = vmul.f32 %v1458, %v1500
          %v1529 = vmul.f32 %v1459, %v1500
          %v1530 = vmul.f32 %v1460, %v1500
          %v1531 = vmul.f32 %v1461, %v1500
          %v1532 = vmul.f32 %v1462, %v1500
          %v1533 = vmul.f32 %v1463, %v1500
          %v1534 = vmul.f32 %v1464, %v1500
          %v1535 = vmul.f32 %v1465, %v1500
          %v1536 = vmul.f32 %v1466, %v1500
          %v1537 = vmul.f32 %v1467, %v1500
          %v1538 = vmul.f32 %v1468, %v1500
          %v1539 = vmul.f32 %v1469, %v1500
          %v1540 = vmul.f32 %v1470, %v1500
          %v1541 = vmul.f32 %v1471, %v1500
          %v1542 = vmul.f32 %v1472, %v1500
          %v1543 = vmul.f32 %v1473, %v1500
          %v1544 = vmul.f32 %v1474, %v1500
          %v1545 = vmul.f32 %v1475, %v1500
          %v1546 = vmul.f32 %v1476, %v1500
          %v1547 = vmul.f32 %v1477, %v1500
          %v1548 = vmul.f32 %v1478, %v1500
          %v1549 = vmul.f32 %v1479, %v1500
          %v1550 = vmul.f32 %v1480, %v1500
          %v1551 = vmul.f32 %v1481, %v1500
          %v1552 = vmul.f32 %v1482, %v1500
          %v1553 = vmul.f32 %v1483, %v1500
          %v1554 = vmul.f32 %v1484, %v1500
          %v1555 = vmul.f32 %v1485, %v1500
          %v1556 = vmul.f32 %v1486, %v1500
          %v1557 = vmul.f32 %v1487, %v1500
          %v1558 = vmul.f32 %v1488, %v1500
          %v1559 = vmul.f32 %v1489, %v1500
          %v1560 = vmul.f32 %v1490, %v1500
          %v1561 = vmul.f32 %v1491, %v1500
          %v1562 = vmul.f32 %v1492, %v1500
          %v1563 = vmul.f32 %v1493, %v1500
          %v1564 = vmul.f32 %v1494, %v1500
          %v1565 = vmul.f32 %v1495, %v1500
          %v1567 = vlaneseq
          %v1568 = vshrl.u32 %v1567, 7
          %v1569 = vsub.s32 0, %v1568
          %v1570 = vrot.slane %v1431, %v1569
          %v1572 = vadd.f32 %v1502, %v1570
          %v1573 = vadd.f32 %v1503, %v1570
          %v1574 = vadd.f32 %v1504, %v1570
          %v1575 = vadd.f32 %v1505, %v1570
          %v1576 = vadd.f32 %v1506, %v1570
          %v1577 = vadd.f32 %v1507, %v1570
          %v1578 = vadd.f32 %v1508, %v1570
          %v1579 = vadd.f32 %v1509, %v1570
          %v1580 = vadd.f32 %v1510, %v1570
          %v1581 = vadd.f32 %v1511, %v1570
          %v1582 = vadd.f32 %v1512, %v1570
          %v1583 = vadd.f32 %v1513, %v1570
          %v1584 = vadd.f32 %v1514, %v1570
          %v1585 = vadd.f32 %v1515, %v1570
          %v1586 = vadd.f32 %v1516, %v1570
          %v1587 = vadd.f32 %v1517, %v1570
          %v1588 = vadd.f32 %v1518, %v1570
          %v1589 = vadd.f32 %v1519, %v1570
          %v1590 = vadd.f32 %v1520, %v1570
          %v1591 = vadd.f32 %v1521, %v1570
          %v1592 = vadd.f32 %v1522, %v1570
          %v1593 = vadd.f32 %v1523, %v1570
          %v1594 = vadd.f32 %v1524, %v1570
          %v1595 = vadd.f32 %v1525, %v1570
          %v1596 = vadd.f32 %v1526, %v1570
          %v1597 = vadd.f32 %v1527, %v1570
          %v1598 = vadd.f32 %v1528, %v1570
          %v1599 = vadd.f32 %v1529, %v1570
          %v1600 = vadd.f32 %v1530, %v1570
          %v1601 = vadd.f32 %v1531, %v1570
          %v1602 = vadd.f32 %v1532, %v1570
          %v1603 = vadd.f32 %v1533, %v1570
          %v1604 = vadd.f32 %v1534, %v1570
          %v1605 = vadd.f32 %v1535, %v1570
          %v1606 = vadd.f32 %v1536, %v1570
          %v1607 = vadd.f32 %v1537, %v1570
          %v1608 = vadd.f32 %v1538, %v1570
          %v1609 = vadd.f32 %v1539, %v1570
          %v1610 = vadd.f32 %v1540, %v1570
          %v1611 = vadd.f32 %v1541, %v1570
          %v1612 = vadd.f32 %v1542, %v1570
          %v1613 = vadd.f32 %v1543, %v1570
          %v1614 = vadd.f32 %v1544, %v1570
          %v1615 = vadd.f32 %v1545, %v1570
          %v1616 = vadd.f32 %v1546, %v1570
          %v1617 = vadd.f32 %v1547, %v1570
          %v1618 = vadd.f32 %v1548, %v1570
          %v1619 = vadd.f32 %v1549, %v1570
          %v1620 = vadd.f32 %v1550, %v1570
          %v1621 = vadd.f32 %v1551, %v1570
          %v1622 = vadd.f32 %v1552, %v1570
          %v1623 = vadd.f32 %v1553, %v1570
          %v1624 = vadd.f32 %v1554, %v1570
          %v1625 = vadd.f32 %v1555, %v1570
          %v1626 = vadd.f32 %v1556, %v1570
          %v1627 = vadd.f32 %v1557, %v1570
          %v1628 = vadd.f32 %v1558, %v1570
          %v1629 = vadd.f32 %v1559, %v1570
          %v1630 = vadd.f32 %v1560, %v1570
          %v1631 = vadd.f32 %v1561, %v1570
          %v1632 = vadd.f32 %v1562, %v1570
          %v1633 = vadd.f32 %v1563, %v1570
          %v1634 = vadd.f32 %v1564, %v1570
          %v1635 = vadd.f32 %v1565, %v1570
          %v1636 = vmax.f32 %v1572, 0.0
          %v1637 = vmax.f32 %v1573, 0.0
          %v1638 = vmax.f32 %v1574, 0.0
          %v1639 = vmax.f32 %v1575, 0.0
          %v1640 = vmax.f32 %v1576, 0.0
          %v1641 = vmax.f32 %v1577, 0.0
          %v1642 = vmax.f32 %v1578, 0.0
          %v1643 = vmax.f32 %v1579, 0.0
          %v1644 = vmax.f32 %v1580, 0.0
          %v1645 = vmax.f32 %v1581, 0.0
          %v1646 = vmax.f32 %v1582, 0.0
          %v1647 = vmax.f32 %v1583, 0.0
          %v1648 = vmax.f32 %v1584, 0.0
          %v1649 = vmax.f32 %v1585, 0.0
          %v1650 = vmax.f32 %v1586, 0.0
          %v1651 = vmax.f32 %v1587, 0.0
          %v1652 = vmax.f32 %v1588, 0.0
          %v1653 = vmax.f32 %v1589, 0.0
          %v1654 = vmax.f32 %v1590, 0.0
          %v1655 = vmax.f32 %v1591, 0.0
          %v1656 = vmax.f32 %v1592, 0.0
          %v1657 = vmax.f32 %v1593, 0.0
          %v1658 = vmax.f32 %v1594, 0.0
          %v1659 = vmax.f32 %v1595, 0.0
          %v1660 = vmax.f32 %v1596, 0.0
          %v1661 = vmax.f32 %v1597, 0.0
          %v1662 = vmax.f32 %v1598, 0.0
          %v1663 = vmax.f32 %v1599, 0.0
          %v1664 = vmax.f32 %v1600, 0.0
          %v1665 = vmax.f32 %v1601, 0.0
          %v1666 = vmax.f32 %v1602, 0.0
          %v1667 = vmax.f32 %v1603, 0.0
          %v1668 = vmax.f32 %v1604, 0.0
          %v1669 = vmax.f32 %v1605, 0.0
          %v1670 = vmax.f32 %v1606, 0.0
          %v1671 = vmax.f32 %v1607, 0.0
          %v1672 = vmax.f32 %v1608, 0.0
          %v1673 = vmax.f32 %v1609, 0.0
          %v1674 = vmax.f32 %v1610, 0.0
          %v1675 = vmax.f32 %v1611, 0.0
          %v1676 = vmax.f32 %v1612, 0.0
          %v1677 = vmax.f32 %v1613, 0.0
          %v1678 = vmax.f32 %v1614, 0.0
          %v1679 = vmax.f32 %v1615, 0.0
          %v1680 = vmax.f32 %v1616, 0.0
          %v1681 = vmax.f32 %v1617, 0.0
          %v1682 = vmax.f32 %v1618, 0.0
          %v1683 = vmax.f32 %v1619, 0.0
          %v1684 = vmax.f32 %v1620, 0.0
          %v1685 = vmax.f32 %v1621, 0.0
          %v1686 = vmax.f32 %v1622, 0.0
          %v1687 = vmax.f32 %v1623, 0.0
          %v1688 = vmax.f32 %v1624, 0.0
          %v1689 = vmax.f32 %v1625, 0.0
          %v1690 = vmax.f32 %v1626, 0.0
          %v1691 = vmax.f32 %v1627, 0.0
          %v1692 = vmax.f32 %v1628, 0.0
          %v1693 = vmax.f32 %v1629, 0.0
          %v1694 = vmax.f32 %v1630, 0.0
          %v1695 = vmax.f32 %v1631, 0.0
          %v1696 = vmax.f32 %v1632, 0.0
          %v1697 = vmax.f32 %v1633, 0.0
          %v1698 = vmax.f32 %v1634, 0.0
          %v1699 = vmax.f32 %v1635, 0.0
          %1700 = vst [vmem:[#allocation7] sm:$0xff] %v1636
          %1701 = vst [vmem:[#allocation7 + $0x8] sm:$0xff] %v1637
          %1702 = vst [vmem:[#allocation7 + $0x10] sm:$0xff] %v1638
          %1703 = vst [vmem:[#allocation7 + $0x18] sm:$0xff] %v1639
          %1704 = vst [vmem:[#allocation7 + $0x20] sm:$0xff] %v1640
          %1705 = vst [vmem:[#allocation7 + $0x28] sm:$0xff] %v1641
          %1706 = vst [vmem:[#allocation7 + $0x30] sm:$0xff] %v1642
          %1707 = vst [vmem:[#allocation7 + $0x38] sm:$0xff] %v1643
          %1708 = vst [vmem:[#allocation7 + $0x40] sm:$0xff] %v1644
          %1709 = vst [vmem:[#allocation7 + $0x48] sm:$0xff] %v1645
          %1710 = vst [vmem:[#allocation7 + $0x50] sm:$0xff] %v1646
          %1711 = vst [vmem:[#allocation7 + $0x58] sm:$0xff] %v1647
          %1712 = vst [vmem:[#allocation7 + $0x60] sm:$0xff] %v1648
          %1713 = vst [vmem:[#allocation7 + $0x68] sm:$0xff] %v1649
          %1714 = vst [vmem:[#allocation7 + $0x70] sm:$0xff] %v1650
          %1715 = vst [vmem:[#allocation7 + $0x78] sm:$0xff] %v1651
          %1716 = vst [vmem:[#allocation7 + $0x80] sm:$0xff] %v1652
          %1717 = vst [vmem:[#allocation7 + $0x88] sm:$0xff] %v1653
          %1718 = vst [vmem:[#allocation7 + $0x90] sm:$0xff] %v1654
          %1719 = vst [vmem:[#allocation7 + $0x98] sm:$0xff] %v1655
          %1720 = vst [vmem:[#allocation7 + $0xa0] sm:$0xff] %v1656
          %1721 = vst [vmem:[#allocation7 + $0xa8] sm:$0xff] %v1657
          %1722 = vst [vmem:[#allocation7 + $0xb0] sm:$0xff] %v1658
          %1723 = vst [vmem:[#allocation7 + $0xb8] sm:$0xff] %v1659
          %1724 = vst [vmem:[#allocation7 + $0xc0] sm:$0xff] %v1660
          %1725 = vst [vmem:[#allocation7 + $0xc8] sm:$0xff] %v1661
          %1726 = vst [vmem:[#allocation7 + $0xd0] sm:$0xff] %v1662
          %1727 = vst [vmem:[#allocation7 + $0xd8] sm:$0xff] %v1663
          %1728 = vst [vmem:[#allocation7 + $0xe0] sm:$0xff] %v1664
          %1729 = vst [vmem:[#allocation7 + $0xe8] sm:$0xff] %v1665
          %1730 = vst [vmem:[#allocation7 + $0xf0] sm:$0xff] %v1666
          %1731 = vst [vmem:[#allocation7 + $0xf8] sm:$0xff] %v1667
          %1732 = vst [vmem:[#allocation7 + $0x100] sm:$0xff] %v1668
          %1733 = vst [vmem:[#allocation7 + $0x108] sm:$0xff] %v1669
          %1734 = vst [vmem:[#allocation7 + $0x110] sm:$0xff] %v1670
          %1735 = vst [vmem:[#allocation7 + $0x118] sm:$0xff] %v1671
          %1736 = vst [vmem:[#allocation7 + $0x120] sm:$0xff] %v1672
          %1737 = vst [vmem:[#allocation7 + $0x128] sm:$0xff] %v1673
          %1738 = vst [vmem:[#allocation7 + $0x130] sm:$0xff] %v1674
          %1739 = vst [vmem:[#allocation7 + $0x138] sm:$0xff] %v1675
          %1740 = vst [vmem:[#allocation7 + $0x140] sm:$0xff] %v1676
          %1741 = vst [vmem:[#allocation7 + $0x148] sm:$0xff] %v1677
          %1742 = vst [vmem:[#allocation7 + $0x150] sm:$0xff] %v1678
          %1743 = vst [vmem:[#allocation7 + $0x158] sm:$0xff] %v1679
          %1744 = vst [vmem:[#allocation7 + $0x160] sm:$0xff] %v1680
          %1745 = vst [vmem:[#allocation7 + $0x168] sm:$0xff] %v1681
          %1746 = vst [vmem:[#allocation7 + $0x170] sm:$0xff] %v1682
          %1747 = vst [vmem:[#allocation7 + $0x178] sm:$0xff] %v1683
          %1748 = vst [vmem:[#allocation7 + $0x180] sm:$0xff] %v1684
          %1749 = vst [vmem:[#allocation7 + $0x188] sm:$0xff] %v1685
          %1750 = vst [vmem:[#allocation7 + $0x190] sm:$0xff] %v1686
          %1751 = vst [vmem:[#allocation7 + $0x198] sm:$0xff] %v1687
          %1752 = vst [vmem:[#allocation7 + $0x1a0] sm:$0xff] %v1688
          %1753 = vst [vmem:[#allocation7 + $0x1a8] sm:$0xff] %v1689
          %1754 = vst [vmem:[#allocation7 + $0x1b0] sm:$0xff] %v1690
          %1755 = vst [vmem:[#allocation7 + $0x1b8] sm:$0xff] %v1691
          %1756 = vst [vmem:[#allocation7 + $0x1c0] sm:$0xff] %v1692
          %1757 = vst [vmem:[#allocation7 + $0x1c8] sm:$0xff] %v1693
          %1758 = vst [vmem:[#allocation7 + $0x1d0] sm:$0xff] %v1694
          %1759 = vst [vmem:[#allocation7 + $0x1d8] sm:$0xff] %v1695
          %1760 = vst [vmem:[#allocation7 + $0x1e0] sm:$0xff] %v1696
          %1761 = vst [vmem:[#allocation7 + $0x1e8] sm:$0xff] %v1697
          %1762 = vst [vmem:[#allocation7 + $0x1f0] sm:$0xff] %v1698
          %1763 = vst [vmem:[#allocation7 + $0x1f8] sm:$0xff] %v1699
        $region52: #{graph_convolution.1} parent=39 // pred_fallthru
          _
        // Predicated region
        $region53: #{graph_convolution.1} parent=39 // pred_check
          %p1764 = pneg %p143
        $region54: #{graph_convolution.1} parent=39 // pred_check_branch
          %1766 = sbr.rel (%p1764) target = $region56
        $region55: #{graph_convolution.1} parent=39 // pred_region
          %s1768 = ssub.s32 8192, 8192
          %1769 = vsyncadd [#allocation6], %s1768
          %s1770 = sshll.u32 [#allocation7], 4
          %s1771 = int_to_ptr.vmem [resolvable:$true] %s1770
          %1776 = dma.vmem_to_hbm [thread:$0]  %s1771, 8192, %s5, [#allocation6], 128, 128, 8
        $region56: #{graph_convolution.1} parent=39 // pred_fallthru
          _
        // Predicated region
        $region57: #{graph_convolution.1} parent=39 // pred_check
          %p1777 = pneg %p143
        $region58: #{graph_convolution.1} parent=39 // pred_check_branch
          %1779 = sbr.rel (%p1777) target = $region60
        $region59: #{graph_convolution.1} parent=39 // pred_region
          %1780 = dma.done [#allocation6], 8192
        $region60: #{graph_convolution.1} parent=39 // pred_fallthru
          _
      $region40: #{graph_convolution.1} parent=5 // pred_fallthru
        _
      %p1781 = scmp.le.s32.totalorder 2, %s15
      // Predicated region
      $region61: #{graph_convolution.1} parent=5 // pred_check
        %p1782 = pneg %p1781
      $region62: #{graph_convolution.1} parent=5 // pred_check_branch
        %1784 = sbr.rel (%p1782) target = $region64
      $region63: #{graph_convolution.1} parent=5 // pred_region
        %s1785 = ssub.s32 %s15, 2
      $region64: #{graph_convolution.1} parent=5 // pred_fallthru
        _
    $region6: #{graph_convolution.1} parent=1 // loop_footer
      %s19 = sadd.s32 1, %s15
    $region7: #{graph_convolution.1} parent=1 // loop_footer_branch
      %14 = sbr.rel target = $region3
    $region8: #{graph_convolution.1} parent=1 // loop_exit
      _
    %1786 = vsyncpa [#allocation5], 1
    %s1787 = scalar_lea.sflag [#allocation5], 1
    %1788 = vsyncpa %s1787, 1
    %1789 = vsyncpa [#allocation6], 1
    %s1790 = scalar_lea.sflag [#allocation6], 1
    %1791 = vsyncpa %s1790, 1

</llo_original>
